<compile_context>
chip_gen: v6e
topology: v6e:2x2x1
jax: 0.10.0
libtpu: 0.0.40
codegen_flags: <defaults>
</compile_context>

<pallas_src>
import math

import jax
import jax.numpy as jnp
from jax.experimental import pallas as pl
from jax.experimental.pallas import tpu as pltpu

IN_DIM = 5          # logical input features
IN_DIM_PAD = 8      # padded to one sublane tile
HID = 256
OUT_DIM = 366       # logical output features
OUT_DIM_PAD = 384   # padded to a multiple of 128 lanes


def mlp_kernel(x_ref, w1_ref, b1_ref, w2_ref, b2_ref, w3_ref, b3_ref, o_ref):
    # Layer 1: Linear(5 -> 256) + ReLU   (MXU bf16 operands, f32 accumulate)
    h1 = jnp.dot(x_ref[...].astype(jnp.bfloat16), w1_ref[...],
                 preferred_element_type=jnp.float32)
    h1 = jnp.maximum(h1 + b1_ref[...], 0.0)

    # Layer 2: Linear(256 -> 256) + ReLU
    h2 = jnp.dot(h1.astype(jnp.bfloat16), w2_ref[...],
                 preferred_element_type=jnp.float32)
    h2 = jnp.maximum(h2 + b2_ref[...], 0.0)

    # Layer 3: Linear(256 -> 384-padded), no activation
    h3 = jnp.dot(h2.astype(jnp.bfloat16), w3_ref[...],
                 preferred_element_type=jnp.float32)
    h3 = h3 + b3_ref[...]

    o_ref[...] = h3.astype(o_ref.dtype)


def teste_forward(x, params, *, block_batch=256):
    """x: (B, 5) float32. params: dict of padded bf16 weights / f32 biases.

    Returns (B, 366) float32 matching the PyTorch module's forward.
    """
    B = x.shape[0]
    w1, b1 = params["w1"], params["b1"]   # (8, 256) bf16, (1, 256) f32
    w2, b2 = params["w2"], params["b2"]   # (256, 256) bf16, (1, 256) f32
    w3, b3 = params["w3"], params["b3"]   # (256, 384) bf16, (1, 384) f32

    TB = block_batch
    assert TB % 8 == 0, "batch tile must be a multiple of 8 sublanes"
    num_tiles = pl.cdiv(B, TB)
    B_pad = num_tiles * TB

    # Zero-pad batch to a multiple of TB and K from 5 to 8.
    x_pad = jnp.pad(x, ((0, B_pad - B), (0, IN_DIM_PAD - IN_DIM)))

    resident = lambda shape: pl.BlockSpec(shape, lambda i: (0, 0))

    out_pad = pl.pallas_call(
        mlp_kernel,
        out_shape=jax.ShapeDtypeStruct((B_pad, OUT_DIM_PAD), jnp.float32),
        grid=(num_tiles,),
        in_specs=[
            pl.BlockSpec((TB, IN_DIM_PAD), lambda i: (i, 0)),  # x: tiled on batch
            resident(w1.shape), resident(b1.shape),            # weights/biases
            resident(w2.shape), resident(b2.shape),            # stay VMEM-resident
            resident(w3.shape), resident(b3.shape),
        ],
        out_specs=pl.BlockSpec((TB, OUT_DIM_PAD), lambda i: (i, 0)),
        compiler_params=pltpu.CompilerParams(
            dimension_semantics=("parallel",),
        ),
    )(x_pad, w1, b1, w2, b2, w3, b3)

    # Slice off batch and lane padding (keep padded form if consumed downstream).
    return out_pad[:B, :OUT_DIM]


def init_params(key):
    """Deterministic init mimicking PyTorch nn.Linear default:
    U(-1/sqrt(fan_in), 1/sqrt(fan_in)) for both weight and bias.
    Weights stored (in, out), zero-padded to TPU-friendly shapes, cast bf16."""
    layers = [
        (IN_DIM, HID, IN_DIM_PAD, HID),        # c1
        (HID, HID, HID, HID),                  # c2
        (HID, OUT_DIM, HID, OUT_DIM_PAD),      # c3
    ]
    params = {}
    for i, (fan_in, fan_out, kp, npad) in enumerate(layers, start=1):
        key, kw, kb = jax.random.split(key, 3)
        bound = 1.0 / math.sqrt(fan_in)
        w = jax.random.uniform(kw, (fan_in, fan_out), jnp.float32,
                               minval=-bound, maxval=bound)
        b = jax.random.uniform(kb, (1, fan_out), jnp.float32,
                               minval=-bound, maxval=bound)
        w_pad = jnp.zeros((kp, npad), jnp.float32).at[:fan_in, :fan_out].set(w)
        b_pad = jnp.zeros((1, npad), jnp.float32).at[:, :fan_out].set(b)
        params[f"w{i}"] = w_pad.astype(jnp.bfloat16)   # MXU operands in bf16
        params[f"b{i}"] = b_pad                        # bias add stays f32
    return params


def _dot_bf16(a_f32, w_bf16):
    return jnp.dot(a_f32.astype(jnp.bfloat16), w_bf16,
                   preferred_element_type=jnp.float32)


def reference_forward(x, params):
    """Plain-JAX reference mirroring the kernel's numerics (bf16 MXU operands,
    f32 accumulation, f32 bias/ReLU)."""
    xp = jnp.pad(x, ((0, 0), (0, IN_DIM_PAD - IN_DIM)))
    h1 = jnp.maximum(_dot_bf16(xp, params["w1"]) + params["b1"], 0.0)
    h2 = jnp.maximum(_dot_bf16(h1, params["w2"]) + params["b2"], 0.0)
    h3 = _dot_bf16(h2, params["w3"]) + params["b3"]
    return h3[:, :OUT_DIM]


if __name__ == "__main__":
    key = jax.random.PRNGKey(0)
    key, kx = jax.random.split(key)

    # Small-ish batch that exercises both the batch grid (2 tiles of 256) and
    # the batch-padding path (300 -> 512).
    B = 300
    x = jax.random.normal(kx, (B, 5), jnp.float32)

    params = init_params(key)

    out = jax.block_until_ready(teste_forward(x, params))

    ref = reference_forward(x, params)
    assert out.shape == (B, OUT_DIM), out.shape
    assert jnp.allclose(out, ref, atol=1e-3, rtol=1e-3), "mismatch vs reference"

    print("KERNEL_OK")
</pallas_src>

<mosaic_0001>
module attributes {stable_mosaic.version = 11 : i64} {
  func.func @mlp_kernel(%arg0: i32, %arg1: memref<256x8xf32, #tpu.memory_space<vmem>>, %arg2: memref<8x256xbf16, #tpu.memory_space<vmem>>, %arg3: memref<1x256xf32, #tpu.memory_space<vmem>>, %arg4: memref<256x256xbf16, #tpu.memory_space<vmem>>, %arg5: memref<1x256xf32, #tpu.memory_space<vmem>>, %arg6: memref<256x384xbf16, #tpu.memory_space<vmem>>, %arg7: memref<1x384xf32, #tpu.memory_space<vmem>>, %arg8: memref<256x384xf32, #tpu.memory_space<vmem>>) attributes {dimension_semantics = [#tpu.dimension_semantics<parallel>], iteration_bounds = array<i64: 2>, scalar_prefetch = 0 : i64, scratch_operands = 0 : i64, tpu.core_type = #tpu.core_type<tc>, window_params = [{transform_indices = @transform_0, window_bounds = array<i64: 256, 8>}, {pipeline_mode = #tpu.pipeline_mode<synchronous>, transform_indices = @transform_1, window_bounds = array<i64: 8, 256>}, {pipeline_mode = #tpu.pipeline_mode<synchronous>, transform_indices = @transform_2, window_bounds = array<i64: 1, 256>}, {pipeline_mode = #tpu.pipeline_mode<synchronous>, transform_indices = @transform_3, window_bounds = array<i64: 256, 256>}, {pipeline_mode = #tpu.pipeline_mode<synchronous>, transform_indices = @transform_4, window_bounds = array<i64: 1, 256>}, {pipeline_mode = #tpu.pipeline_mode<synchronous>, transform_indices = @transform_5, window_bounds = array<i64: 256, 384>}, {pipeline_mode = #tpu.pipeline_mode<synchronous>, transform_indices = @transform_6, window_bounds = array<i64: 1, 384>}, {transform_indices = @transform_7, window_bounds = array<i64: 256, 384>}]} {
    %c0 = arith.constant 0 : index
    %c0_0 = arith.constant 0 : index
    %0 = vector.load %arg1[%c0, %c0_0] : memref<256x8xf32, #tpu.memory_space<vmem>>, vector<256x8xf32>
    %1 = arith.truncf %0 : vector<256x8xf32> to vector<256x8xbf16>
    %c0_1 = arith.constant 0 : index
    %c0_2 = arith.constant 0 : index
    %2 = vector.load %arg2[%c0_1, %c0_2] : memref<8x256xbf16, #tpu.memory_space<vmem>>, vector<8x256xbf16>
    %cst = arith.constant dense<0.000000e+00> : vector<256x256xf32>
    %3 = tpu.matmul %1, %2, %cst {dimension_numbers = #tpu.dot_dimension_numbers<[1], [0], [0], [1], [0, 0, 1, 1], [], []>} : vector<256x8xbf16>, vector<8x256xbf16>, vector<256x256xf32> -> vector<256x256xf32>
    %c0_3 = arith.constant 0 : index
    %c0_4 = arith.constant 0 : index
    %4 = vector.load %arg3[%c0_3, %c0_4] : memref<1x256xf32, #tpu.memory_space<vmem>>, vector<1x256xf32>
    %5 = vector.broadcast %4 : vector<1x256xf32> to vector<256x256xf32>
    %6 = arith.addf %3, %5 : vector<256x256xf32>
    %cst_5 = arith.constant 0.000000e+00 : f32
    %7 = vector.broadcast %cst_5 : f32 to vector<256x256xf32>
    %8 = arith.maximumf %6, %7 : vector<256x256xf32>
    %9 = arith.truncf %8 : vector<256x256xf32> to vector<256x256xbf16>
    %c0_6 = arith.constant 0 : index
    %c0_7 = arith.constant 0 : index
    %10 = vector.load %arg4[%c0_6, %c0_7] : memref<256x256xbf16, #tpu.memory_space<vmem>>, vector<256x256xbf16>
    %cst_8 = arith.constant dense<0.000000e+00> : vector<256x256xf32>
    %11 = tpu.matmul %9, %10, %cst_8 {dimension_numbers = #tpu.dot_dimension_numbers<[1], [0], [0], [1], [0, 0, 1, 1], [], []>} : vector<256x256xbf16>, vector<256x256xbf16>, vector<256x256xf32> -> vector<256x256xf32>
    %c0_9 = arith.constant 0 : index
    %c0_10 = arith.constant 0 : index
    %12 = vector.load %arg5[%c0_9, %c0_10] : memref<1x256xf32, #tpu.memory_space<vmem>>, vector<1x256xf32>
    %13 = vector.broadcast %12 : vector<1x256xf32> to vector<256x256xf32>
    %14 = arith.addf %11, %13 : vector<256x256xf32>
    %cst_11 = arith.constant 0.000000e+00 : f32
    %15 = vector.broadcast %cst_11 : f32 to vector<256x256xf32>
    %16 = arith.maximumf %14, %15 : vector<256x256xf32>
    %17 = arith.truncf %16 : vector<256x256xf32> to vector<256x256xbf16>
    %c0_12 = arith.constant 0 : index
    %c0_13 = arith.constant 0 : index
    %18 = vector.load %arg6[%c0_12, %c0_13] : memref<256x384xbf16, #tpu.memory_space<vmem>>, vector<256x384xbf16>
    %cst_14 = arith.constant dense<0.000000e+00> : vector<256x384xf32>
    %19 = tpu.matmul %17, %18, %cst_14 {dimension_numbers = #tpu.dot_dimension_numbers<[1], [0], [0], [1], [0, 0, 1, 1], [], []>} : vector<256x256xbf16>, vector<256x384xbf16>, vector<256x384xf32> -> vector<256x384xf32>
    %c0_15 = arith.constant 0 : index
    %c0_16 = arith.constant 0 : index
    %20 = vector.load %arg7[%c0_15, %c0_16] : memref<1x384xf32, #tpu.memory_space<vmem>>, vector<1x384xf32>
    %21 = vector.broadcast %20 : vector<1x384xf32> to vector<256x384xf32>
    %22 = arith.addf %19, %21 : vector<256x384xf32>
    %c0_17 = arith.constant 0 : index
    %c0_18 = arith.constant 0 : index
    %23 = vector.load %arg8[%c0_17, %c0_18] : memref<256x384xf32, #tpu.memory_space<vmem>>, vector<256x384xf32>
    tpu.vector_store %arg8[%c0_17, %c0_18], %22 {strides = array<i32>} : memref<256x384xf32, #tpu.memory_space<vmem>>, vector<256x384xf32>,
    return
  }
  func.func @transform_0(%arg0: i32) -> (i32, i32) {
    %c0_i32 = arith.constant 0 : i32
    %c0_i32_0 = arith.constant 0 : i32
    return %arg0, %c0_i32 : i32, i32
  }
  func.func @transform_1(%arg0: i32) -> (i32, i32) {
    %c0_i32 = arith.constant 0 : i32
    %c0_i32_0 = arith.constant 0 : i32
    %c0_i32_1 = arith.constant 0 : i32
    return %c0_i32, %c0_i32_0 : i32, i32
  }
  func.func @transform_2(%arg0: i32) -> (i32, i32) {
    %c0_i32 = arith.constant 0 : i32
    %c0_i32_0 = arith.constant 0 : i32
    %c0_i32_1 = arith.constant 0 : i32
    return %c0_i32, %c0_i32_0 : i32, i32
  }
  func.func @transform_3(%arg0: i32) -> (i32, i32) {
    %c0_i32 = arith.constant 0 : i32
    %c0_i32_0 = arith.constant 0 : i32
    %c0_i32_1 = arith.constant 0 : i32
    return %c0_i32, %c0_i32_0 : i32, i32
  }
  func.func @transform_4(%arg0: i32) -> (i32, i32) {
    %c0_i32 = arith.constant 0 : i32
    %c0_i32_0 = arith.constant 0 : i32
    %c0_i32_1 = arith.constant 0 : i32
    return %c0_i32, %c0_i32_0 : i32, i32
  }
  func.func @transform_5(%arg0: i32) -> (i32, i32) {
    %c0_i32 = arith.constant 0 : i32
    %c0_i32_0 = arith.constant 0 : i32
    %c0_i32_1 = arith.constant 0 : i32
    return %c0_i32, %c0_i32_0 : i32, i32
  }
  func.func @transform_6(%arg0: i32) -> (i32, i32) {
    %c0_i32 = arith.constant 0 : i32
    %c0_i32_0 = arith.constant 0 : i32
    %c0_i32_1 = arith.constant 0 : i32
    return %c0_i32, %c0_i32_0 : i32, i32
  }
  func.func @transform_7(%arg0: i32) -> (i32, i32) {
    %c0_i32 = arith.constant 0 : i32
    %c0_i32_0 = arith.constant 0 : i32
    return %arg0, %c0_i32 : i32, i32
  }
}

</mosaic_0001>

<llo_original>
// kernel: tpu_custom_call.1
$region0: #{tpu_custom_call.1}
  #allocation0 [shape = 'u32[]', space=smem, size = 0x4, offset = 0x4, fixed_abs, tag = 'smem constant byte address 0x4 - core index']
  #allocation1 [shape = 'u32[144,128]{1,0:T(1,128)}', space=vmem, size = 0x12000, scoped, tag = 'internal scratch']
  %s0 = inlined_call_operand.vmem [shape: f32[512,8], index: 0, kind: input, shape index: {}]
  %s1 = inlined_call_operand.vmem [shape: bf16[8,256], index: 1, kind: input, shape index: {}]
  %s2 = inlined_call_operand.vmem [shape: f32[1,256], index: 2, kind: input, shape index: {}]
  %s3 = inlined_call_operand.hbm [shape: bf16[256,256], index: 3, kind: input, shape index: {}]
  %s4 = inlined_call_operand.vmem [shape: f32[1,256], index: 4, kind: input, shape index: {}]
  %s5 = inlined_call_operand.vmem [shape: bf16[256,384], index: 5, kind: input, shape index: {}]
  %s6 = inlined_call_operand.vmem [shape: f32[1,384], index: 6, kind: input, shape index: {}]
  %s7 = inlined_call_operand.hbm [shape: f32[512,384], index: 7, kind: output, shape index: {}]
  %s8 = sld [smem:[#allocation0]]
  $region65: #{tpu_custom_call.1} parent=0
    _
  %s10 = ssub.s32 1, %s8
  %s11 = scalar_select 0, %s10, %s8
  $region1: #{tpu_custom_call.1} parent=0
    #allocation2 [shape = 'u8[131072]{0}', space=vmem, size = 0x20000, scoped, tag = 'input window, operand 3, single buffered']
    #allocation3 [shape = 's32[2]{0}', space=sflag, size = 0x8, scoped, tag = 'scoped memory for tpu_custom_call.1']
    #allocation4 [shape = 's32[2]{0}', space=sflag, size = 0x8, scoped, tag = 'scoped memory for tpu_custom_call.1']
    #allocation5 [shape = 'u8[786432]{0}', space=vmem, size = 0xc0000, scoped, tag = 'output window, operand 0']
    %12 = vsyncpa [#allocation3], 0
    %13 = vsyncpa [#allocation4], 0
    %s14 = scalar_lea.sflag [#allocation4], 1
    %15 = vsyncpa %s14, 0
    loop: start=0, step=1, limit=4
    $region2: #{tpu_custom_call.1} parent=1 // loop_pre_header
      _
    $region3: #{tpu_custom_call.1} parent=1 // loop_header
      %s17 = sphi 0, %s21
      %p18 = scmp.ge.s32.totalorder %s17, 4
      %s27 = sphi 0, %s29
      %s30 = sphi 0, %s27
      %s31 = sphi 0, %s30
      %s47 = sphi 0, %s31
      %s51 = sphi 0, %s51
      %s53 = sphi 0, %s51
      %s54 = sphi 0, %s53
      %s68 = sphi 0, %s54
      %s72 = sphi 0, %s72
      %s74 = sphi 0, %s72
      %s75 = sphi 0, %s74
      %s89 = sphi 0, %s75
      %s93 = sphi 0, %s93
      %s95 = sphi 0, %s93
      %s96 = sphi 0, %s95
      %s110 = sphi 0, %s96
      %s114 = sphi 0, %s114
      %s116 = sphi 0, %s114
      %s117 = sphi 0, %s116
      %s131 = sphi 0, %s117
      %s135 = sphi 0, %s135
      %s137 = sphi 0, %s135
      %s138 = sphi 0, %s137
      %s152 = sphi 0, %s138
      %s156 = sphi 0, %s156
      %s158 = sphi 0, %s156
      %s159 = sphi 0, %s158
      %s173 = sphi 0, %s159
      %s179 = sphi 0, %s181
      %s182 = sphi 0, %s179
      %s183 = sphi 0, %s182
      %s199 = sphi 0, %s183
    $region4: #{tpu_custom_call.1} parent=1 // loop_header_branch
      %20 = sbr.rel (%p18) target = $region8
    $region5: #{tpu_custom_call.1} parent=1 // loop_body
      %s22 = ssub.s32 %s17, 1
      %s23 = ssub.s32 %s17, 2
      %s24 = sadd.s32 %s17, 1
      %s25 = ssub.s32 %s17, %s24
      %p26 = scmp.eq.s32.totalorder %s25, 0
      %s28 = sadd.s32 %s27, 1
      %s29 = scalar_select %p26, %s27, %s28
      %p32 = pneg %p26
      %p33 = scmp.eq.s32.totalorder %s17, 1
      %p34 = por %p32, %p33
      %p35 = scmp.ne.s32.totalorder %s27, %s30
      %p36 = scmp.eq.s32.totalorder %s17, 0
      %p37 = por %p35, %p36
      %p38 = scmp.ne.s32.totalorder %s27, %s30
      %p39 = scmp.eq.s32.totalorder %s22, 1
      %p40 = por %p38, %p39
      %p41 = scmp.ne.s32.totalorder %s30, %s31
      %p42 = scmp.eq.s32.totalorder %s22, 0
      %p43 = por %p41, %p42
      %p44 = scmp.ne.s32.totalorder %s30, %s31
      %p45 = scmp.eq.s32.totalorder %s23, 1
      %p46 = por %p44, %p45
      %p48 = scmp.ne.s32.totalorder %s31, %s47
      %p49 = scmp.eq.s32.totalorder %s23, 0
      %p50 = por %p48, %p49
      %s52 = sadd.s32 %s51, 1
      %p55 = scmp.eq.s32.totalorder %s17, 1
      %p56 = scmp.ne.s32.totalorder %s51, %s53
      %p57 = scmp.eq.s32.totalorder %s17, 0
      %p58 = por %p56, %p57
      %p59 = scmp.ne.s32.totalorder %s51, %s53
      %p60 = scmp.eq.s32.totalorder %s22, 1
      %p61 = por %p59, %p60
      %p62 = scmp.ne.s32.totalorder %s53, %s54
      %p63 = scmp.eq.s32.totalorder %s22, 0
      %p64 = por %p62, %p63
      %p65 = scmp.ne.s32.totalorder %s53, %s54
      %p66 = scmp.eq.s32.totalorder %s23, 1
      %p67 = por %p65, %p66
      %p69 = scmp.ne.s32.totalorder %s54, %s68
      %p70 = scmp.eq.s32.totalorder %s23, 0
      %p71 = por %p69, %p70
      %s73 = sadd.s32 %s72, 1
      %p76 = scmp.eq.s32.totalorder %s17, 1
      %p77 = scmp.ne.s32.totalorder %s72, %s74
      %p78 = scmp.eq.s32.totalorder %s17, 0
      %p79 = por %p77, %p78
      %p80 = scmp.ne.s32.totalorder %s72, %s74
      %p81 = scmp.eq.s32.totalorder %s22, 1
      %p82 = por %p80, %p81
      %p83 = scmp.ne.s32.totalorder %s74, %s75
      %p84 = scmp.eq.s32.totalorder %s22, 0
      %p85 = por %p83, %p84
      %p86 = scmp.ne.s32.totalorder %s74, %s75
      %p87 = scmp.eq.s32.totalorder %s23, 1
      %p88 = por %p86, %p87
      %p90 = scmp.ne.s32.totalorder %s75, %s89
      %p91 = scmp.eq.s32.totalorder %s23, 0
      %p92 = por %p90, %p91
      %s94 = sadd.s32 %s93, 1
      %p97 = scmp.eq.s32.totalorder %s17, 1
      %p98 = scmp.ne.s32.totalorder %s93, %s95
      %p99 = scmp.eq.s32.totalorder %s17, 0
      %p100 = por %p98, %p99
      %p101 = scmp.ne.s32.totalorder %s93, %s95
      %p102 = scmp.eq.s32.totalorder %s22, 1
      %p103 = por %p101, %p102
      %p104 = scmp.ne.s32.totalorder %s95, %s96
      %p105 = scmp.eq.s32.totalorder %s22, 0
      %p106 = por %p104, %p105
      %p107 = scmp.ne.s32.totalorder %s95, %s96
      %p108 = scmp.eq.s32.totalorder %s23, 1
      %p109 = por %p107, %p108
      %p111 = scmp.ne.s32.totalorder %s96, %s110
      %p112 = scmp.eq.s32.totalorder %s23, 0
      %p113 = por %p111, %p112
      %s115 = sadd.s32 %s114, 1
      %p118 = scmp.eq.s32.totalorder %s17, 1
      %p119 = scmp.ne.s32.totalorder %s114, %s116
      %p120 = scmp.eq.s32.totalorder %s17, 0
      %p121 = por %p119, %p120
      %p122 = scmp.ne.s32.totalorder %s114, %s116
      %p123 = scmp.eq.s32.totalorder %s22, 1
      %p124 = por %p122, %p123
      %p125 = scmp.ne.s32.totalorder %s116, %s117
      %p126 = scmp.eq.s32.totalorder %s22, 0
      %p127 = por %p125, %p126
      %p128 = scmp.ne.s32.totalorder %s116, %s117
      %p129 = scmp.eq.s32.totalorder %s23, 1
      %p130 = por %p128, %p129
      %p132 = scmp.ne.s32.totalorder %s117, %s131
      %p133 = scmp.eq.s32.totalorder %s23, 0
      %p134 = por %p132, %p133
      %s136 = sadd.s32 %s135, 1
      %p139 = scmp.eq.s32.totalorder %s17, 1
      %p140 = scmp.ne.s32.totalorder %s135, %s137
      %p141 = scmp.eq.s32.totalorder %s17, 0
      %p142 = por %p140, %p141
      %p143 = scmp.ne.s32.totalorder %s135, %s137
      %p144 = scmp.eq.s32.totalorder %s22, 1
      %p145 = por %p143, %p144
      %p146 = scmp.ne.s32.totalorder %s137, %s138
      %p147 = scmp.eq.s32.totalorder %s22, 0
      %p148 = por %p146, %p147
      %p149 = scmp.ne.s32.totalorder %s137, %s138
      %p150 = scmp.eq.s32.totalorder %s23, 1
      %p151 = por %p149, %p150
      %p153 = scmp.ne.s32.totalorder %s138, %s152
      %p154 = scmp.eq.s32.totalorder %s23, 0
      %p155 = por %p153, %p154
      %s157 = sadd.s32 %s156, 1
      %p160 = scmp.eq.s32.totalorder %s17, 1
      %p161 = scmp.ne.s32.totalorder %s156, %s158
      %p162 = scmp.eq.s32.totalorder %s17, 0
      %p163 = por %p161, %p162
      %p164 = scmp.ne.s32.totalorder %s156, %s158
      %p165 = scmp.eq.s32.totalorder %s22, 1
      %p166 = por %p164, %p165
      %p167 = scmp.ne.s32.totalorder %s158, %s159
      %p168 = scmp.eq.s32.totalorder %s22, 0
      %p169 = por %p167, %p168
      %p170 = scmp.ne.s32.totalorder %s158, %s159
      %p171 = scmp.eq.s32.totalorder %s23, 1
      %p172 = por %p170, %p171
      %p174 = scmp.ne.s32.totalorder %s159, %s173
      %p175 = scmp.eq.s32.totalorder %s23, 0
      %p176 = por %p174, %p175
      %s177 = ssub.s32 %s17, %s24
      %p178 = scmp.eq.s32.totalorder %s177, 0
      %s180 = sadd.s32 %s179, 1
      %s181 = scalar_select %p178, %s179, %s180
      %p184 = pneg %p178
      %p185 = scmp.eq.s32.totalorder %s17, 1
      %p186 = por %p184, %p185
      %p187 = scmp.ne.s32.totalorder %s179, %s182
      %p188 = scmp.eq.s32.totalorder %s17, 0
      %p189 = por %p187, %p188
      %p190 = scmp.ne.s32.totalorder %s179, %s182
      %p191 = scmp.eq.s32.totalorder %s22, 1
      %p192 = por %p190, %p191
      %p193 = scmp.ne.s32.totalorder %s182, %s183
      %p194 = scmp.eq.s32.totalorder %s22, 0
      %p195 = por %p193, %p194
      %p196 = scmp.ne.s32.totalorder %s182, %s183
      %p197 = scmp.eq.s32.totalorder %s23, 1
      %p198 = por %p196, %p197
      %p200 = scmp.ne.s32.totalorder %s183, %s199
      %p201 = scmp.eq.s32.totalorder %s23, 0
      %p202 = por %p200, %p201
      %p203 = scmp.le.s32.totalorder 1, %s17
      %p204 = scmp.lt.s32.totalorder %s17, 3
      %p205 = pnand %p203, %p204
      %p206 = pneg %p205
      // Predicated region
      $region9: #{tpu_custom_call.1} parent=5 // pred_check
        _
      $region10: #{tpu_custom_call.1} parent=5 // pred_check_branch
        %208 = sbr.rel (%p205) target = $region12
      $region11: #{tpu_custom_call.1} parent=5 // pred_region
        %s209 = ssub.s32 %s17, 1
        // Predicated region
        $region13: #{tpu_custom_call.1} parent=11 // pred_check
          %p210 = pneg %p64
        $region14: #{tpu_custom_call.1} parent=11 // pred_check_branch
          %212 = sbr.rel (%p210) target = $region16
        $region15: #{tpu_custom_call.1} parent=11 // pred_region
          _
        $region16: #{tpu_custom_call.1} parent=11 // pred_fallthru
          _
        // Predicated region
        $region17: #{tpu_custom_call.1} parent=11 // pred_check
          %p213 = pneg %p85
        $region18: #{tpu_custom_call.1} parent=11 // pred_check_branch
          %215 = sbr.rel (%p213) target = $region20
        $region19: #{tpu_custom_call.1} parent=11 // pred_region
          _
        $region20: #{tpu_custom_call.1} parent=11 // pred_fallthru
          _
        // Predicated region
        $region21: #{tpu_custom_call.1} parent=11 // pred_check
          %p216 = pneg %p106
        $region22: #{tpu_custom_call.1} parent=11 // pred_check_branch
          %218 = sbr.rel (%p216) target = $region24
        $region23: #{tpu_custom_call.1} parent=11 // pred_region
          %s220 = ssub.s32 4096, 4096
          %221 = vsyncadd [#allocation3], %s220
          %s222 = sshll.u32 [#allocation2], 4
          %s223 = int_to_ptr.vmem [resolvable:$true] %s222
          %228 = dma.hbm_to_vmem [thread:$0]  %s3, 4096, %s223, [#allocation3], 128, 128, 8
        $region24: #{tpu_custom_call.1} parent=11 // pred_fallthru
          _
        // Predicated region
        $region25: #{tpu_custom_call.1} parent=11 // pred_check
          %p229 = pneg %p127
        $region26: #{tpu_custom_call.1} parent=11 // pred_check_branch
          %231 = sbr.rel (%p229) target = $region28
        $region27: #{tpu_custom_call.1} parent=11 // pred_region
          _
        $region28: #{tpu_custom_call.1} parent=11 // pred_fallthru
          _
        // Predicated region
        $region29: #{tpu_custom_call.1} parent=11 // pred_check
          %p232 = pneg %p148
        $region30: #{tpu_custom_call.1} parent=11 // pred_check_branch
          %234 = sbr.rel (%p232) target = $region32
        $region31: #{tpu_custom_call.1} parent=11 // pred_region
          _
        $region32: #{tpu_custom_call.1} parent=11 // pred_fallthru
          _
        // Predicated region
        $region33: #{tpu_custom_call.1} parent=11 // pred_check
          %p235 = pneg %p169
        $region34: #{tpu_custom_call.1} parent=11 // pred_check_branch
          %237 = sbr.rel (%p235) target = $region36
        $region35: #{tpu_custom_call.1} parent=11 // pred_region
          _
        $region36: #{tpu_custom_call.1} parent=11 // pred_fallthru
          _
      $region12: #{tpu_custom_call.1} parent=5 // pred_fallthru
        _
      %p238 = scmp.lt.s32.totalorder %s17, 2
      // Predicated region
      $region37: #{tpu_custom_call.1} parent=5 // pred_check
        %p239 = pneg %p238
      $region38: #{tpu_custom_call.1} parent=5 // pred_check_branch
        %241 = sbr.rel (%p239) target = $region40
      $region39: #{tpu_custom_call.1} parent=5 // pred_region
        // Predicated region
        $region41: #{tpu_custom_call.1} parent=39 // pred_check
          %p242 = pneg %p37
        $region42: #{tpu_custom_call.1} parent=39 // pred_check_branch
          %244 = sbr.rel (%p242) target = $region44
        $region43: #{tpu_custom_call.1} parent=39 // pred_region
          %s245 = smul.u32 32, %s17
          %p246 = scmp.lt.s32.totalorder %s245, 63
          %s247 = scalar_select %p246, %s245, 63
          %s248 = smul.addr %s247, 8
          %s249 = scalar_lea.vmem %s0, %s248
          %s250 = smul.u32 32, %s17
        $region44: #{tpu_custom_call.1} parent=39 // pred_fallthru
          _
      $region40: #{tpu_custom_call.1} parent=5 // pred_fallthru
        _
      %p251 = scmp.le.s32.totalorder 1, %s17
      %p252 = scmp.lt.s32.totalorder %s17, 3
      %p253 = pnand %p251, %p252
      %p254 = pneg %p253
      // Predicated region
      $region45: #{tpu_custom_call.1} parent=5 // pred_check
        _
      $region46: #{tpu_custom_call.1} parent=5 // pred_check_branch
        %256 = sbr.rel (%p253) target = $region48
      $region47: #{tpu_custom_call.1} parent=5 // pred_region
        %s257 = ssub.s32 %s17, 1
        // Predicated region
        $region49: #{tpu_custom_call.1} parent=47 // pred_check
          %p258 = pneg %p106
        $region50: #{tpu_custom_call.1} parent=47 // pred_check_branch
          %260 = sbr.rel (%p258) target = $region52
        $region51: #{tpu_custom_call.1} parent=47 // pred_region
          %261 = dma.done [#allocation3], 4096
        $region52: #{tpu_custom_call.1} parent=47 // pred_fallthru
          _
        %s262 = smul.u32 32, %s22
        %p263 = scmp.lt.s32.totalorder %s262, 63
        %s264 = scalar_select %p263, %s262, 63
        %s265 = smul.addr %s264, 8
        %s266 = scalar_lea.vmem %s0, %s265
        %p267 = pneg %p43
        %p268 = pneg %p40
        %p269 = pneg %p64
        %p270 = pneg %p61
        %p271 = pneg %p85
        %p272 = pneg %p82
        %p273 = pneg %p106
        %p274 = pneg %p103
        %p275 = pneg %p127
        %p276 = pneg %p124
        %p277 = pneg %p148
        %p278 = pneg %p145
        %p279 = pneg %p169
        %p280 = pneg %p166
        %p281 = pneg %p195
        %p282 = pneg %p192
        %s283 = sand.u32 %s182, 1
        %s284 = scalar_lea.sflag [#allocation4], %s283
        %s285 = sand.u32 %s182, 1
        %s286 = smul.addr %s285, 768
        %s287 = scalar_lea.vmem [#allocation5], %s286
        %s288 = smul.u32 32, %s22
        %p289 = scmp.lt.s32.totalorder %s288, 63
        %s290 = scalar_select %p289, %s288, 63
        %s291 = smul.addr %s290, 8
        %s292 = scalar_lea.vmem %s0, %s291
        %s293 = smul.u32 32, %s22
        %s294 = smul.u32 32, %s22
        %v296 = vld [vmem:[%s292] sm:$0xff]
        %v297 = vld [vmem:[%s292 + $0x8] sm:$0xff]
        %v298 = vld [vmem:[%s292 + $0x10] sm:$0xff]
        %v299 = vld [vmem:[%s292 + $0x18] sm:$0xff]
        %v300 = vld [vmem:[%s292 + $0x20] sm:$0xff]
        %v301 = vld [vmem:[%s292 + $0x28] sm:$0xff]
        %v302 = vld [vmem:[%s292 + $0x30] sm:$0xff]
        %v303 = vld [vmem:[%s292 + $0x38] sm:$0xff]
        %v304 = vld [vmem:[%s292 + $0x40] sm:$0xff]
        %v305 = vld [vmem:[%s292 + $0x48] sm:$0xff]
        %v306 = vld [vmem:[%s292 + $0x50] sm:$0xff]
        %v307 = vld [vmem:[%s292 + $0x58] sm:$0xff]
        %v308 = vld [vmem:[%s292 + $0x60] sm:$0xff]
        %v309 = vld [vmem:[%s292 + $0x68] sm:$0xff]
        %v310 = vld [vmem:[%s292 + $0x70] sm:$0xff]
        %v311 = vld [vmem:[%s292 + $0x78] sm:$0xff]
        %v312 = vld [vmem:[%s292 + $0x80] sm:$0xff]
        %v313 = vld [vmem:[%s292 + $0x88] sm:$0xff]
        %v314 = vld [vmem:[%s292 + $0x90] sm:$0xff]
        %v315 = vld [vmem:[%s292 + $0x98] sm:$0xff]
        %v316 = vld [vmem:[%s292 + $0xa0] sm:$0xff]
        %v317 = vld [vmem:[%s292 + $0xa8] sm:$0xff]
        %v318 = vld [vmem:[%s292 + $0xb0] sm:$0xff]
        %v319 = vld [vmem:[%s292 + $0xb8] sm:$0xff]
        %v320 = vld [vmem:[%s292 + $0xc0] sm:$0xff]
        %v321 = vld [vmem:[%s292 + $0xc8] sm:$0xff]
        %v322 = vld [vmem:[%s292 + $0xd0] sm:$0xff]
        %v323 = vld [vmem:[%s292 + $0xd8] sm:$0xff]
        %v324 = vld [vmem:[%s292 + $0xe0] sm:$0xff]
        %v325 = vld [vmem:[%s292 + $0xe8] sm:$0xff]
        %v326 = vld [vmem:[%s292 + $0xf0] sm:$0xff]
        %v327 = vld [vmem:[%s292 + $0xf8] sm:$0xff]
        %v328 = vpack.c.bf16 %v297, %v296
        %v329 = vpack.c.bf16 %v299, %v298
        %v330 = vpack.c.bf16 %v301, %v300
        %v331 = vpack.c.bf16 %v303, %v302
        %v332 = vpack.c.bf16 %v305, %v304
        %v333 = vpack.c.bf16 %v307, %v306
        %v334 = vpack.c.bf16 %v309, %v308
        %v335 = vpack.c.bf16 %v311, %v310
        %v336 = vpack.c.bf16 %v313, %v312
        %v337 = vpack.c.bf16 %v315, %v314
        %v338 = vpack.c.bf16 %v317, %v316
        %v339 = vpack.c.bf16 %v319, %v318
        %v340 = vpack.c.bf16 %v321, %v320
        %v341 = vpack.c.bf16 %v323, %v322
        %v342 = vpack.c.bf16 %v325, %v324
        %v343 = vpack.c.bf16 %v327, %v326
        %v344 = vld [vmem:[%s1] sm:$0xff]
        %v345 = vld [vmem:[%s2] sm:$0x3]
        %v347 = vlaneseq
        %v348 = vshrl.u32 %v347, 7
        %v349 = vsub.s32 0, %v348
        %v350 = vrot.slane %v345, %v349
        %v351 = vlaneseq
        %v352 = vshrl.u32 %v351, 7
        %v353 = vsub.s32 1, %v352
        %v354 = vrot.slane %v345, %v353
        %v358 = vunpack.c.l.b16 %v344
        %v359 = vunpack.c.h.b16 %v344
        %v360 = vpack.c.b16 %v358, %v358
        %v361 = vpack.c.b16 %v359, %v359
        %vm362 = vcmask 64512
        %v364 = vsel %vm362, %v328, 0
        %v367 = vsel %vm362, %v329, 0
        %v370 = vsel %vm362, %v330, 0
        %v373 = vsel %vm362, %v331, 0
        %v376 = vsel %vm362, %v332, 0
        %v379 = vsel %vm362, %v333, 0
        %v382 = vsel %vm362, %v334, 0
        %v385 = vsel %vm362, %v335, 0
        %v388 = vsel %vm362, %v336, 0
        %v391 = vsel %vm362, %v337, 0
        %v394 = vsel %vm362, %v338, 0
        %v397 = vsel %vm362, %v339, 0
        %v400 = vsel %vm362, %v340, 0
        %v403 = vsel %vm362, %v341, 0
        %v406 = vsel %vm362, %v342, 0
        %v409 = vsel %vm362, %v343, 0
        %vm411 = vcmask 1043456
        %v413 = vsel %vm411, %v360, 0
        %v416 = vsel %vm411, %v361, 0
        %418 = vmatprep.subr.bf16.mxu0 0
        %419 = vmatpush1.bf16.msra.mxu0 0
        %420 = vmatprep.subr.bf16.mxu0 0
        %421 = vmatpush1.bf16.msra.mxu0 0
        %422 = vmatprep.subr.bf16.mxu0 0
        %423 = vmatpush1.bf16.msra.mxu0 0
        %424 = vmatprep.subr.bf16.mxu0 0
        %425 = vmatpush1.bf16.msra.mxu0 0
        %426 = vmatprep.subr.bf16.mxu0 0
        %427 = vmatpush1.bf16.msra.mxu0 0
        %428 = vmatprep.subr.bf16.mxu0 0
        %429 = vmatpush1.bf16.msra.mxu0 0
        %430 = vmatprep.subr.bf16.mxu0 0
        %431 = vmatpush1.bf16.msra.mxu0 0
        %432 = vmatprep.subr.bf16.mxu0 %v416
        %433 = vmatpush1.bf16.msra.mxu0 %v413
        %434 = vmatprep.subr.bf16.mxu0 0
        %435 = vmatpush2.bf16.msra.mxu0 0
        %436 = vmatprep.subr.bf16.mxu0 0
        %437 = vmatpush2.bf16.msra.mxu0 0
        %438 = vmatprep.subr.bf16.mxu0 0
        %439 = vmatpush2.bf16.msra.mxu0 0
        %440 = vmatprep.subr.bf16.mxu0 0
        %441 = vmatpush2.bf16.msra.mxu0 0
        %442 = vmatprep.subr.bf16.mxu0 0
        %443 = vmatpush2.bf16.msra.mxu0 0
        %444 = vmatprep.subr.bf16.mxu0 0
        %445 = vmatpush2.bf16.msra.mxu0 0
        %446 = vmatprep.subr.bf16.mxu0 0
        %447 = vmatpush2.bf16.msra.mxu0 0
        %448 = vmatprep.subr.bf16.mxu0 0
        %449 = vmatpush2.bf16.msra.mxu0 0
        %450 = vmatprep.mubr.bf16.mxu0 0
        %451 = vmatmul.mubr.bf16.gmra.mxu0 %v364
        %v452 = vpop.f32.mrf.mxu0
        %v453 = vadd.f32 %v350, %v452
        %v454 = vpop.f32.mrf.mxu0
        %v455 = vadd.f32 %v354, %v454
        %v456 = vpop.f32.mrf.mxu0
        %v457 = vadd.f32 %v350, %v456
        %v458 = vpop.f32.mrf.mxu0
        %v459 = vadd.f32 %v354, %v458
        %460 = vmatprep.mubr.bf16.mxu0 0
        %461 = vmatmul.mubr.bf16.gmra.mxu0 %v367
        %v462 = vpop.f32.mrf.mxu0
        %v463 = vadd.f32 %v350, %v462
        %v464 = vpop.f32.mrf.mxu0
        %v465 = vadd.f32 %v354, %v464
        %v466 = vpop.f32.mrf.mxu0
        %v467 = vadd.f32 %v350, %v466
        %v468 = vpop.f32.mrf.mxu0
        %v469 = vadd.f32 %v354, %v468
        %470 = vmatprep.mubr.bf16.mxu0 0
        %471 = vmatmul.mubr.bf16.gmra.mxu0 %v370
        %v472 = vpop.f32.mrf.mxu0
        %v473 = vadd.f32 %v350, %v472
        %v474 = vpop.f32.mrf.mxu0
        %v475 = vadd.f32 %v354, %v474
        %v476 = vpop.f32.mrf.mxu0
        %v477 = vadd.f32 %v350, %v476
        %v478 = vpop.f32.mrf.mxu0
        %v479 = vadd.f32 %v354, %v478
        %480 = vmatprep.mubr.bf16.mxu0 0
        %481 = vmatmul.mubr.bf16.gmra.mxu0 %v373
        %v482 = vpop.f32.mrf.mxu0
        %v483 = vadd.f32 %v350, %v482
        %v484 = vpop.f32.mrf.mxu0
        %v485 = vadd.f32 %v354, %v484
        %v486 = vpop.f32.mrf.mxu0
        %v487 = vadd.f32 %v350, %v486
        %v488 = vpop.f32.mrf.mxu0
        %v489 = vadd.f32 %v354, %v488
        %490 = vmatprep.mubr.bf16.mxu0 0
        %491 = vmatmul.mubr.bf16.gmra.mxu0 %v376
        %v492 = vpop.f32.mrf.mxu0
        %v493 = vadd.f32 %v350, %v492
        %v494 = vpop.f32.mrf.mxu0
        %v495 = vadd.f32 %v354, %v494
        %v496 = vpop.f32.mrf.mxu0
        %v497 = vadd.f32 %v350, %v496
        %v498 = vpop.f32.mrf.mxu0
        %v499 = vadd.f32 %v354, %v498
        %500 = vmatprep.mubr.bf16.mxu0 0
        %501 = vmatmul.mubr.bf16.gmra.mxu0 %v379
        %v502 = vpop.f32.mrf.mxu0
        %v503 = vadd.f32 %v350, %v502
        %v504 = vpop.f32.mrf.mxu0
        %v505 = vadd.f32 %v354, %v504
        %v506 = vpop.f32.mrf.mxu0
        %v507 = vadd.f32 %v350, %v506
        %v508 = vpop.f32.mrf.mxu0
        %v509 = vadd.f32 %v354, %v508
        %510 = vmatprep.mubr.bf16.mxu0 0
        %511 = vmatmul.mubr.bf16.gmra.mxu0 %v382
        %v512 = vpop.f32.mrf.mxu0
        %v513 = vadd.f32 %v350, %v512
        %v514 = vpop.f32.mrf.mxu0
        %v515 = vadd.f32 %v354, %v514
        %v516 = vpop.f32.mrf.mxu0
        %v517 = vadd.f32 %v350, %v516
        %v518 = vpop.f32.mrf.mxu0
        %v519 = vadd.f32 %v354, %v518
        %520 = vmatprep.mubr.bf16.mxu0 0
        %521 = vmatmul.mubr.bf16.gmra.mxu0 %v385
        %v522 = vpop.f32.mrf.mxu0
        %v523 = vadd.f32 %v350, %v522
        %v524 = vpop.f32.mrf.mxu0
        %v525 = vadd.f32 %v354, %v524
        %v526 = vpop.f32.mrf.mxu0
        %v527 = vadd.f32 %v350, %v526
        %v528 = vpop.f32.mrf.mxu0
        %v529 = vadd.f32 %v354, %v528
        %530 = vmatprep.mubr.bf16.mxu0 0
        %531 = vmatmul.mubr.bf16.gmra.mxu0 %v388
        %v532 = vpop.f32.mrf.mxu0
        %v533 = vadd.f32 %v350, %v532
        %v534 = vpop.f32.mrf.mxu0
        %v535 = vadd.f32 %v354, %v534
        %v536 = vpop.f32.mrf.mxu0
        %v537 = vadd.f32 %v350, %v536
        %v538 = vpop.f32.mrf.mxu0
        %v539 = vadd.f32 %v354, %v538
        %540 = vmatprep.mubr.bf16.mxu0 0
        %541 = vmatmul.mubr.bf16.gmra.mxu0 %v391
        %v542 = vpop.f32.mrf.mxu0
        %v543 = vadd.f32 %v350, %v542
        %v544 = vpop.f32.mrf.mxu0
        %v545 = vadd.f32 %v354, %v544
        %v546 = vpop.f32.mrf.mxu0
        %v547 = vadd.f32 %v350, %v546
        %v548 = vpop.f32.mrf.mxu0
        %v549 = vadd.f32 %v354, %v548
        %550 = vmatprep.mubr.bf16.mxu0 0
        %551 = vmatmul.mubr.bf16.gmra.mxu0 %v394
        %v552 = vpop.f32.mrf.mxu0
        %v553 = vadd.f32 %v350, %v552
        %v554 = vpop.f32.mrf.mxu0
        %v555 = vadd.f32 %v354, %v554
        %v556 = vpop.f32.mrf.mxu0
        %v557 = vadd.f32 %v350, %v556
        %v558 = vpop.f32.mrf.mxu0
        %v559 = vadd.f32 %v354, %v558
        %560 = vmatprep.mubr.bf16.mxu0 0
        %561 = vmatmul.mubr.bf16.gmra.mxu0 %v397
        %v562 = vpop.f32.mrf.mxu0
        %v563 = vadd.f32 %v350, %v562
        %v564 = vpop.f32.mrf.mxu0
        %v565 = vadd.f32 %v354, %v564
        %v566 = vpop.f32.mrf.mxu0
        %v567 = vadd.f32 %v350, %v566
        %v568 = vpop.f32.mrf.mxu0
        %v569 = vadd.f32 %v354, %v568
        %570 = vmatprep.mubr.bf16.mxu0 0
        %571 = vmatmul.mubr.bf16.gmra.mxu0 %v400
        %v572 = vpop.f32.mrf.mxu0
        %v573 = vadd.f32 %v350, %v572
        %v574 = vpop.f32.mrf.mxu0
        %v575 = vadd.f32 %v354, %v574
        %v576 = vpop.f32.mrf.mxu0
        %v577 = vadd.f32 %v350, %v576
        %v578 = vpop.f32.mrf.mxu0
        %v579 = vadd.f32 %v354, %v578
        %580 = vmatprep.mubr.bf16.mxu0 0
        %581 = vmatmul.mubr.bf16.gmra.mxu0 %v403
        %v582 = vpop.f32.mrf.mxu0
        %v583 = vadd.f32 %v350, %v582
        %v584 = vpop.f32.mrf.mxu0
        %v585 = vadd.f32 %v354, %v584
        %v586 = vpop.f32.mrf.mxu0
        %v587 = vadd.f32 %v350, %v586
        %v588 = vpop.f32.mrf.mxu0
        %v589 = vadd.f32 %v354, %v588
        %590 = vmatprep.mubr.bf16.mxu0 0
        %591 = vmatmul.mubr.bf16.gmra.mxu0 %v406
        %v592 = vpop.f32.mrf.mxu0
        %v593 = vadd.f32 %v350, %v592
        %v594 = vpop.f32.mrf.mxu0
        %v595 = vadd.f32 %v354, %v594
        %v596 = vpop.f32.mrf.mxu0
        %v597 = vadd.f32 %v350, %v596
        %v598 = vpop.f32.mrf.mxu0
        %v599 = vadd.f32 %v354, %v598
        %600 = vmatprep.mubr.bf16.mxu0 0
        %601 = vmatmul.mubr.bf16.gmra.mxu0 %v409
        %v602 = vpop.f32.mrf.mxu0
        %v603 = vadd.f32 %v350, %v602
        %v604 = vpop.f32.mrf.mxu0
        %v605 = vadd.f32 %v354, %v604
        %v606 = vpop.f32.mrf.mxu0
        %v607 = vadd.f32 %v350, %v606
        %v608 = vpop.f32.mrf.mxu0
        %v609 = vadd.f32 %v354, %v608
        %610 = vdwg.mxu0
        %v611 = vmax.f32 %v453, 0.0
        %v612 = vmax.f32 %v455, 0.0
        %v613 = vmax.f32 %v457, 0.0
        %v614 = vmax.f32 %v459, 0.0
        %v615 = vmax.f32 %v463, 0.0
        %v616 = vmax.f32 %v465, 0.0
        %v617 = vmax.f32 %v467, 0.0
        %v618 = vmax.f32 %v469, 0.0
        %v619 = vmax.f32 %v473, 0.0
        %v620 = vmax.f32 %v475, 0.0
        %v621 = vmax.f32 %v477, 0.0
        %v622 = vmax.f32 %v479, 0.0
        %v623 = vmax.f32 %v483, 0.0
        %v624 = vmax.f32 %v485, 0.0
        %v625 = vmax.f32 %v487, 0.0
        %v626 = vmax.f32 %v489, 0.0
        %v627 = vmax.f32 %v493, 0.0
        %v628 = vmax.f32 %v495, 0.0
        %v629 = vmax.f32 %v497, 0.0
        %v630 = vmax.f32 %v499, 0.0
        %v631 = vmax.f32 %v503, 0.0
        %v632 = vmax.f32 %v505, 0.0
        %v633 = vmax.f32 %v507, 0.0
        %v634 = vmax.f32 %v509, 0.0
        %v635 = vmax.f32 %v513, 0.0
        %v636 = vmax.f32 %v515, 0.0
        %v637 = vmax.f32 %v517, 0.0
        %v638 = vmax.f32 %v519, 0.0
        %v639 = vmax.f32 %v523, 0.0
        %v640 = vmax.f32 %v525, 0.0
        %v641 = vmax.f32 %v527, 0.0
        %v642 = vmax.f32 %v529, 0.0
        %v643 = vmax.f32 %v533, 0.0
        %v644 = vmax.f32 %v535, 0.0
        %v645 = vmax.f32 %v537, 0.0
        %v646 = vmax.f32 %v539, 0.0
        %v647 = vmax.f32 %v543, 0.0
        %v648 = vmax.f32 %v545, 0.0
        %v649 = vmax.f32 %v547, 0.0
        %v650 = vmax.f32 %v549, 0.0
        %v651 = vmax.f32 %v553, 0.0
        %v652 = vmax.f32 %v555, 0.0
        %v653 = vmax.f32 %v557, 0.0
        %v654 = vmax.f32 %v559, 0.0
        %v655 = vmax.f32 %v563, 0.0
        %v656 = vmax.f32 %v565, 0.0
        %v657 = vmax.f32 %v567, 0.0
        %v658 = vmax.f32 %v569, 0.0
        %v659 = vmax.f32 %v573, 0.0
        %v660 = vmax.f32 %v575, 0.0
        %v661 = vmax.f32 %v577, 0.0
        %v662 = vmax.f32 %v579, 0.0
        %v663 = vmax.f32 %v583, 0.0
        %v664 = vmax.f32 %v585, 0.0
        %v665 = vmax.f32 %v587, 0.0
        %v666 = vmax.f32 %v589, 0.0
        %v667 = vmax.f32 %v593, 0.0
        %v668 = vmax.f32 %v595, 0.0
        %v669 = vmax.f32 %v597, 0.0
        %v670 = vmax.f32 %v599, 0.0
        %v671 = vmax.f32 %v603, 0.0
        %v672 = vmax.f32 %v605, 0.0
        %v673 = vmax.f32 %v607, 0.0
        %v674 = vmax.f32 %v609, 0.0
        %v675 = vpack.c.bf16 %v613, %v611
        %v676 = vpack.c.bf16 %v614, %v612
        %v677 = vpack.c.bf16 %v617, %v615
        %v678 = vpack.c.bf16 %v618, %v616
        %v679 = vpack.c.bf16 %v621, %v619
        %v680 = vpack.c.bf16 %v622, %v620
        %v681 = vpack.c.bf16 %v625, %v623
        %v682 = vpack.c.bf16 %v626, %v624
        %v683 = vpack.c.bf16 %v629, %v627
        %v684 = vpack.c.bf16 %v630, %v628
        %v685 = vpack.c.bf16 %v633, %v631
        %v686 = vpack.c.bf16 %v634, %v632
        %v687 = vpack.c.bf16 %v637, %v635
        %v688 = vpack.c.bf16 %v638, %v636
        %v689 = vpack.c.bf16 %v641, %v639
        %v690 = vpack.c.bf16 %v642, %v640
        %v691 = vpack.c.bf16 %v645, %v643
        %v692 = vpack.c.bf16 %v646, %v644
        %v693 = vpack.c.bf16 %v649, %v647
        %v694 = vpack.c.bf16 %v650, %v648
        %v695 = vpack.c.bf16 %v653, %v651
        %v696 = vpack.c.bf16 %v654, %v652
        %v697 = vpack.c.bf16 %v657, %v655
        %v698 = vpack.c.bf16 %v658, %v656
        %v699 = vpack.c.bf16 %v661, %v659
        %v700 = vpack.c.bf16 %v662, %v660
        %v701 = vpack.c.bf16 %v665, %v663
        %v702 = vpack.c.bf16 %v666, %v664
        %v703 = vpack.c.bf16 %v669, %v667
        %v704 = vpack.c.bf16 %v670, %v668
        %v705 = vpack.c.bf16 %v673, %v671
        %v706 = vpack.c.bf16 %v674, %v672
        %v707 = vld [vmem:[#allocation2] sm:$0xff]
        %v708 = vld [vmem:[#allocation2 + $0x8] sm:$0xff]
        %v709 = vld [vmem:[#allocation2 + $0x10] sm:$0xff]
        %v710 = vld [vmem:[#allocation2 + $0x18] sm:$0xff]
        %v711 = vld [vmem:[#allocation2 + $0x20] sm:$0xff]
        %v712 = vld [vmem:[#allocation2 + $0x28] sm:$0xff]
        %v713 = vld [vmem:[#allocation2 + $0x30] sm:$0xff]
        %v714 = vld [vmem:[#allocation2 + $0x38] sm:$0xff]
        %v715 = vld [vmem:[#allocation2 + $0x40] sm:$0xff]
        %v716 = vld [vmem:[#allocation2 + $0x48] sm:$0xff]
        %v717 = vld [vmem:[#allocation2 + $0x50] sm:$0xff]
        %v718 = vld [vmem:[#allocation2 + $0x58] sm:$0xff]
        %v719 = vld [vmem:[#allocation2 + $0x60] sm:$0xff]
        %v720 = vld [vmem:[#allocation2 + $0x68] sm:$0xff]
        %v721 = vld [vmem:[#allocation2 + $0x70] sm:$0xff]
        %v722 = vld [vmem:[#allocation2 + $0x78] sm:$0xff]
        %v723 = vld [vmem:[#allocation2 + $0x80] sm:$0xff]
        %v724 = vld [vmem:[#allocation2 + $0x88] sm:$0xff]
        %v725 = vld [vmem:[#allocation2 + $0x90] sm:$0xff]
        %v726 = vld [vmem:[#allocation2 + $0x98] sm:$0xff]
        %v727 = vld [vmem:[#allocation2 + $0xa0] sm:$0xff]
        %v728 = vld [vmem:[#allocation2 + $0xa8] sm:$0xff]
        %v729 = vld [vmem:[#allocation2 + $0xb0] sm:$0xff]
        %v730 = vld [vmem:[#allocation2 + $0xb8] sm:$0xff]
        %v731 = vld [vmem:[#allocation2 + $0xc0] sm:$0xff]
        %v732 = vld [vmem:[#allocation2 + $0xc8] sm:$0xff]
        %v733 = vld [vmem:[#allocation2 + $0xd0] sm:$0xff]
        %v734 = vld [vmem:[#allocation2 + $0xd8] sm:$0xff]
        %v735 = vld [vmem:[#allocation2 + $0xe0] sm:$0xff]
        %v736 = vld [vmem:[#allocation2 + $0xe8] sm:$0xff]
        %v737 = vld [vmem:[#allocation2 + $0xf0] sm:$0xff]
        %v738 = vld [vmem:[#allocation2 + $0xf8] sm:$0xff]
        %v739 = vld [vmem:[%s4] sm:$0x3]
        %v741 = vlaneseq
        %v742 = vshrl.u32 %v741, 7
        %v743 = vsub.s32 0, %v742
        %v744 = vrot.slane %v739, %v743
        %v745 = vlaneseq
        %v746 = vshrl.u32 %v745, 7
        %v747 = vsub.s32 1, %v746
        %v748 = vrot.slane %v739, %v747
        %v783 = vunpack.c.l.b16 %v707
        %v784 = vunpack.c.h.b16 %v707
        %v785 = vunpack.c.l.b16 %v708
        %v786 = vunpack.c.h.b16 %v708
        %v787 = vunpack.c.l.b16 %v709
        %v788 = vunpack.c.h.b16 %v709
        %v789 = vunpack.c.l.b16 %v710
        %v790 = vunpack.c.h.b16 %v710
        %v791 = vunpack.c.l.b16 %v711
        %v792 = vunpack.c.h.b16 %v711
        %v793 = vunpack.c.l.b16 %v712
        %v794 = vunpack.c.h.b16 %v712
        %v795 = vunpack.c.l.b16 %v713
        %v796 = vunpack.c.h.b16 %v713
        %v797 = vunpack.c.l.b16 %v714
        %v798 = vunpack.c.h.b16 %v714
        %v799 = vunpack.c.l.b16 %v715
        %v800 = vunpack.c.h.b16 %v715
        %v801 = vunpack.c.l.b16 %v716
        %v802 = vunpack.c.h.b16 %v716
        %v803 = vunpack.c.l.b16 %v717
        %v804 = vunpack.c.h.b16 %v717
        %v805 = vunpack.c.l.b16 %v718
        %v806 = vunpack.c.h.b16 %v718
        %v807 = vunpack.c.l.b16 %v719
        %v808 = vunpack.c.h.b16 %v719
        %v809 = vunpack.c.l.b16 %v720
        %v810 = vunpack.c.h.b16 %v720
        %v811 = vunpack.c.l.b16 %v721
        %v812 = vunpack.c.h.b16 %v721
        %v813 = vunpack.c.l.b16 %v722
        %v814 = vunpack.c.h.b16 %v722
        %v815 = vunpack.c.l.b16 %v723
        %v816 = vunpack.c.h.b16 %v723
        %v817 = vunpack.c.l.b16 %v724
        %v818 = vunpack.c.h.b16 %v724
        %v819 = vunpack.c.l.b16 %v725
        %v820 = vunpack.c.h.b16 %v725
        %v821 = vunpack.c.l.b16 %v726
        %v822 = vunpack.c.h.b16 %v726
        %v823 = vunpack.c.l.b16 %v727
        %v824 = vunpack.c.h.b16 %v727
        %v825 = vunpack.c.l.b16 %v728
        %v826 = vunpack.c.h.b16 %v728
        %v827 = vunpack.c.l.b16 %v729
        %v828 = vunpack.c.h.b16 %v729
        %v829 = vunpack.c.l.b16 %v730
        %v830 = vunpack.c.h.b16 %v730
        %v831 = vunpack.c.l.b16 %v731
        %v832 = vunpack.c.h.b16 %v731
        %v833 = vunpack.c.l.b16 %v732
        %v834 = vunpack.c.h.b16 %v732
        %v835 = vunpack.c.l.b16 %v733
        %v836 = vunpack.c.h.b16 %v733
        %v837 = vunpack.c.l.b16 %v734
        %v838 = vunpack.c.h.b16 %v734
        %v839 = vunpack.c.l.b16 %v735
        %v840 = vunpack.c.h.b16 %v735
        %v841 = vunpack.c.l.b16 %v736
        %v842 = vunpack.c.h.b16 %v736
        %v843 = vunpack.c.l.b16 %v737
        %v844 = vunpack.c.h.b16 %v737
        %v845 = vunpack.c.l.b16 %v738
        %v846 = vunpack.c.h.b16 %v738
        %v847 = vpack.c.b16 %v785, %v783
        %v848 = vpack.c.b16 %v786, %v784
        %v849 = vpack.c.b16 %v789, %v787
        %v850 = vpack.c.b16 %v790, %v788
        %v851 = vpack.c.b16 %v793, %v791
        %v852 = vpack.c.b16 %v794, %v792
        %v853 = vpack.c.b16 %v797, %v795
        %v854 = vpack.c.b16 %v798, %v796
        %v855 = vpack.c.b16 %v801, %v799
        %v856 = vpack.c.b16 %v802, %v800
        %v857 = vpack.c.b16 %v805, %v803
        %v858 = vpack.c.b16 %v806, %v804
        %v859 = vpack.c.b16 %v809, %v807
        %v860 = vpack.c.b16 %v810, %v808
        %v861 = vpack.c.b16 %v813, %v811
        %v862 = vpack.c.b16 %v814, %v812
        %v863 = vpack.c.b16 %v817, %v815
        %v864 = vpack.c.b16 %v818, %v816
        %v865 = vpack.c.b16 %v821, %v819
        %v866 = vpack.c.b16 %v822, %v820
        %v867 = vpack.c.b16 %v825, %v823
        %v868 = vpack.c.b16 %v826, %v824
        %v869 = vpack.c.b16 %v829, %v827
        %v870 = vpack.c.b16 %v830, %v828
        %v871 = vpack.c.b16 %v833, %v831
        %v872 = vpack.c.b16 %v834, %v832
        %v873 = vpack.c.b16 %v837, %v835
        %v874 = vpack.c.b16 %v838, %v836
        %v875 = vpack.c.b16 %v841, %v839
        %v876 = vpack.c.b16 %v842, %v840
        %v877 = vpack.c.b16 %v845, %v843
        %v878 = vpack.c.b16 %v846, %v844
        %911 = vmatprep.subr.bf16.mxu0 %v862
        %912 = vmatpush1.bf16.msra.mxu0 %v861
        %913 = vmatprep.subr.bf16.mxu0 %v860
        %914 = vmatpush1.bf16.msra.mxu0 %v859
        %915 = vmatprep.subr.bf16.mxu0 %v858
        %916 = vmatpush1.bf16.msra.mxu0 %v857
        %917 = vmatprep.subr.bf16.mxu0 %v856
        %918 = vmatpush1.bf16.msra.mxu0 %v855
        %919 = vmatprep.subr.bf16.mxu0 %v854
        %920 = vmatpush1.bf16.msra.mxu0 %v853
        %921 = vmatprep.subr.bf16.mxu0 %v852
        %922 = vmatpush1.bf16.msra.mxu0 %v851
        %923 = vmatprep.subr.bf16.mxu0 %v850
        %924 = vmatpush1.bf16.msra.mxu0 %v849
        %925 = vmatprep.subr.bf16.mxu0 %v848
        %926 = vmatpush1.bf16.msra.mxu0 %v847
        %927 = vmatprep.subr.bf16.mxu0 %v878
        %928 = vmatpush2.bf16.msra.mxu0 %v877
        %929 = vmatprep.subr.bf16.mxu0 %v876
        %930 = vmatpush2.bf16.msra.mxu0 %v875
        %931 = vmatprep.subr.bf16.mxu0 %v874
        %932 = vmatpush2.bf16.msra.mxu0 %v873
        %933 = vmatprep.subr.bf16.mxu0 %v872
        %934 = vmatpush2.bf16.msra.mxu0 %v871
        %935 = vmatprep.subr.bf16.mxu0 %v870
        %936 = vmatpush2.bf16.msra.mxu0 %v869
        %937 = vmatprep.subr.bf16.mxu0 %v868
        %938 = vmatpush2.bf16.msra.mxu0 %v867
        %939 = vmatprep.subr.bf16.mxu0 %v866
        %940 = vmatpush2.bf16.msra.mxu0 %v865
        %941 = vmatprep.subr.bf16.mxu0 %v864
        %942 = vmatpush2.bf16.msra.mxu0 %v863
        %943 = vmatprep.mubr.bf16.mxu0 %v676
        %944 = vmatmul.mubr.bf16.gmra.mxu0 %v675
        %v945 = vpop.f32.mrf.mxu0
        %v946 = vadd.f32 %v744, %v945
        %v947 = vpop.f32.mrf.mxu0
        %v948 = vadd.f32 %v748, %v947
        %v949 = vpop.f32.mrf.mxu0
        %v950 = vadd.f32 %v744, %v949
        %v951 = vpop.f32.mrf.mxu0
        %v952 = vadd.f32 %v748, %v951
        %953 = vmatprep.mubr.bf16.mxu0 %v678
        %954 = vmatmul.mubr.bf16.gmra.mxu0 %v677
        %v955 = vpop.f32.mrf.mxu0
        %v956 = vadd.f32 %v744, %v955
        %v957 = vpop.f32.mrf.mxu0
        %v958 = vadd.f32 %v748, %v957
        %v959 = vpop.f32.mrf.mxu0
        %v960 = vadd.f32 %v744, %v959
        %v961 = vpop.f32.mrf.mxu0
        %v962 = vadd.f32 %v748, %v961
        %963 = vmatprep.mubr.bf16.mxu0 %v680
        %964 = vmatmul.mubr.bf16.gmra.mxu0 %v679
        %v965 = vpop.f32.mrf.mxu0
        %v966 = vadd.f32 %v744, %v965
        %v967 = vpop.f32.mrf.mxu0
        %v968 = vadd.f32 %v748, %v967
        %v969 = vpop.f32.mrf.mxu0
        %v970 = vadd.f32 %v744, %v969
        %v971 = vpop.f32.mrf.mxu0
        %v972 = vadd.f32 %v748, %v971
        %973 = vmatprep.mubr.bf16.mxu0 %v682
        %974 = vmatmul.mubr.bf16.gmra.mxu0 %v681
        %v975 = vpop.f32.mrf.mxu0
        %v976 = vadd.f32 %v744, %v975
        %v977 = vpop.f32.mrf.mxu0
        %v978 = vadd.f32 %v748, %v977
        %v979 = vpop.f32.mrf.mxu0
        %v980 = vadd.f32 %v744, %v979
        %v981 = vpop.f32.mrf.mxu0
        %v982 = vadd.f32 %v748, %v981
        %983 = vmatprep.mubr.bf16.mxu0 %v684
        %984 = vmatmul.mubr.bf16.gmra.mxu0 %v683
        %v985 = vpop.f32.mrf.mxu0
        %v986 = vadd.f32 %v744, %v985
        %v987 = vpop.f32.mrf.mxu0
        %v988 = vadd.f32 %v748, %v987
        %v989 = vpop.f32.mrf.mxu0
        %v990 = vadd.f32 %v744, %v989
        %v991 = vpop.f32.mrf.mxu0
        %v992 = vadd.f32 %v748, %v991
        %993 = vmatprep.mubr.bf16.mxu0 %v686
        %994 = vmatmul.mubr.bf16.gmra.mxu0 %v685
        %v995 = vpop.f32.mrf.mxu0
        %v996 = vadd.f32 %v744, %v995
        %v997 = vpop.f32.mrf.mxu0
        %v998 = vadd.f32 %v748, %v997
        %v999 = vpop.f32.mrf.mxu0
        %v1000 = vadd.f32 %v744, %v999
        %v1001 = vpop.f32.mrf.mxu0
        %v1002 = vadd.f32 %v748, %v1001
        %1003 = vmatprep.mubr.bf16.mxu0 %v688
        %1004 = vmatmul.mubr.bf16.gmra.mxu0 %v687
        %v1005 = vpop.f32.mrf.mxu0
        %v1006 = vadd.f32 %v744, %v1005
        %v1007 = vpop.f32.mrf.mxu0
        %v1008 = vadd.f32 %v748, %v1007
        %v1009 = vpop.f32.mrf.mxu0
        %v1010 = vadd.f32 %v744, %v1009
        %v1011 = vpop.f32.mrf.mxu0
        %v1012 = vadd.f32 %v748, %v1011
        %1013 = vmatprep.mubr.bf16.mxu0 %v690
        %1014 = vmatmul.mubr.bf16.gmra.mxu0 %v689
        %v1015 = vpop.f32.mrf.mxu0
        %v1016 = vadd.f32 %v744, %v1015
        %v1017 = vpop.f32.mrf.mxu0
        %v1018 = vadd.f32 %v748, %v1017
        %v1019 = vpop.f32.mrf.mxu0
        %v1020 = vadd.f32 %v744, %v1019
        %v1021 = vpop.f32.mrf.mxu0
        %v1022 = vadd.f32 %v748, %v1021
        %1023 = vmatprep.mubr.bf16.mxu0 %v692
        %1024 = vmatmul.mubr.bf16.gmra.mxu0 %v691
        %v1025 = vpop.f32.mrf.mxu0
        %v1026 = vadd.f32 %v744, %v1025
        %v1027 = vpop.f32.mrf.mxu0
        %v1028 = vadd.f32 %v748, %v1027
        %v1029 = vpop.f32.mrf.mxu0
        %v1030 = vadd.f32 %v744, %v1029
        %v1031 = vpop.f32.mrf.mxu0
        %v1032 = vadd.f32 %v748, %v1031
        %1033 = vmatprep.mubr.bf16.mxu0 %v694
        %1034 = vmatmul.mubr.bf16.gmra.mxu0 %v693
        %v1035 = vpop.f32.mrf.mxu0
        %v1036 = vadd.f32 %v744, %v1035
        %v1037 = vpop.f32.mrf.mxu0
        %v1038 = vadd.f32 %v748, %v1037
        %v1039 = vpop.f32.mrf.mxu0
        %v1040 = vadd.f32 %v744, %v1039
        %v1041 = vpop.f32.mrf.mxu0
        %v1042 = vadd.f32 %v748, %v1041
        %1043 = vmatprep.mubr.bf16.mxu0 %v696
        %1044 = vmatmul.mubr.bf16.gmra.mxu0 %v695
        %v1045 = vpop.f32.mrf.mxu0
        %v1046 = vadd.f32 %v744, %v1045
        %v1047 = vpop.f32.mrf.mxu0
        %v1048 = vadd.f32 %v748, %v1047
        %v1049 = vpop.f32.mrf.mxu0
        %v1050 = vadd.f32 %v744, %v1049
        %v1051 = vpop.f32.mrf.mxu0
        %v1052 = vadd.f32 %v748, %v1051
        %1053 = vmatprep.mubr.bf16.mxu0 %v698
        %1054 = vmatmul.mubr.bf16.gmra.mxu0 %v697
        %v1055 = vpop.f32.mrf.mxu0
        %v1056 = vadd.f32 %v744, %v1055
        %v1057 = vpop.f32.mrf.mxu0
        %v1058 = vadd.f32 %v748, %v1057
        %v1059 = vpop.f32.mrf.mxu0
        %v1060 = vadd.f32 %v744, %v1059
        %v1061 = vpop.f32.mrf.mxu0
        %v1062 = vadd.f32 %v748, %v1061
        %1063 = vmatprep.mubr.bf16.mxu0 %v700
        %1064 = vmatmul.mubr.bf16.gmra.mxu0 %v699
        %v1065 = vpop.f32.mrf.mxu0
        %v1066 = vadd.f32 %v744, %v1065
        %v1067 = vpop.f32.mrf.mxu0
        %v1068 = vadd.f32 %v748, %v1067
        %v1069 = vpop.f32.mrf.mxu0
        %v1070 = vadd.f32 %v744, %v1069
        %v1071 = vpop.f32.mrf.mxu0
        %v1072 = vadd.f32 %v748, %v1071
        %1073 = vmatprep.mubr.bf16.mxu0 %v702
        %1074 = vmatmul.mubr.bf16.gmra.mxu0 %v701
        %v1075 = vpop.f32.mrf.mxu0
        %v1076 = vadd.f32 %v744, %v1075
        %v1077 = vpop.f32.mrf.mxu0
        %v1078 = vadd.f32 %v748, %v1077
        %v1079 = vpop.f32.mrf.mxu0
        %v1080 = vadd.f32 %v744, %v1079
        %v1081 = vpop.f32.mrf.mxu0
        %v1082 = vadd.f32 %v748, %v1081
        %1083 = vmatprep.mubr.bf16.mxu0 %v704
        %1084 = vmatmul.mubr.bf16.gmra.mxu0 %v703
        %v1085 = vpop.f32.mrf.mxu0
        %v1086 = vadd.f32 %v744, %v1085
        %v1087 = vpop.f32.mrf.mxu0
        %v1088 = vadd.f32 %v748, %v1087
        %v1089 = vpop.f32.mrf.mxu0
        %v1090 = vadd.f32 %v744, %v1089
        %v1091 = vpop.f32.mrf.mxu0
        %v1092 = vadd.f32 %v748, %v1091
        %1093 = vmatprep.mubr.bf16.mxu0 %v706
        %1094 = vmatmul.mubr.bf16.gmra.mxu0 %v705
        %v1095 = vpop.f32.mrf.mxu0
        %v1096 = vadd.f32 %v744, %v1095
        %v1097 = vpop.f32.mrf.mxu0
        %v1098 = vadd.f32 %v748, %v1097
        %v1099 = vpop.f32.mrf.mxu0
        %v1100 = vadd.f32 %v744, %v1099
        %v1101 = vpop.f32.mrf.mxu0
        %v1102 = vadd.f32 %v748, %v1101
        %1103 = vdwg.mxu0
        %v1104 = vmax.f32 %v946, 0.0
        %v1105 = vmax.f32 %v948, 0.0
        %v1106 = vmax.f32 %v950, 0.0
        %v1107 = vmax.f32 %v952, 0.0
        %v1108 = vmax.f32 %v956, 0.0
        %v1109 = vmax.f32 %v958, 0.0
        %v1110 = vmax.f32 %v960, 0.0
        %v1111 = vmax.f32 %v962, 0.0
        %v1112 = vmax.f32 %v966, 0.0
        %v1113 = vmax.f32 %v968, 0.0
        %v1114 = vmax.f32 %v970, 0.0
        %v1115 = vmax.f32 %v972, 0.0
        %v1116 = vmax.f32 %v976, 0.0
        %v1117 = vmax.f32 %v978, 0.0
        %v1118 = vmax.f32 %v980, 0.0
        %v1119 = vmax.f32 %v982, 0.0
        %v1120 = vmax.f32 %v986, 0.0
        %v1121 = vmax.f32 %v988, 0.0
        %v1122 = vmax.f32 %v990, 0.0
        %v1123 = vmax.f32 %v992, 0.0
        %v1124 = vmax.f32 %v996, 0.0
        %v1125 = vmax.f32 %v998, 0.0
        %v1126 = vmax.f32 %v1000, 0.0
        %v1127 = vmax.f32 %v1002, 0.0
        %v1128 = vmax.f32 %v1006, 0.0
        %v1129 = vmax.f32 %v1008, 0.0
        %v1130 = vmax.f32 %v1010, 0.0
        %v1131 = vmax.f32 %v1012, 0.0
        %v1132 = vmax.f32 %v1016, 0.0
        %v1133 = vmax.f32 %v1018, 0.0
        %v1134 = vmax.f32 %v1020, 0.0
        %v1135 = vmax.f32 %v1022, 0.0
        %v1136 = vmax.f32 %v1026, 0.0
        %v1137 = vmax.f32 %v1028, 0.0
        %v1138 = vmax.f32 %v1030, 0.0
        %v1139 = vmax.f32 %v1032, 0.0
        %v1140 = vmax.f32 %v1036, 0.0
        %v1141 = vmax.f32 %v1038, 0.0
        %v1142 = vmax.f32 %v1040, 0.0
        %v1143 = vmax.f32 %v1042, 0.0
        %v1144 = vmax.f32 %v1046, 0.0
        %v1145 = vmax.f32 %v1048, 0.0
        %v1146 = vmax.f32 %v1050, 0.0
        %v1147 = vmax.f32 %v1052, 0.0
        %v1148 = vmax.f32 %v1056, 0.0
        %v1149 = vmax.f32 %v1058, 0.0
        %v1150 = vmax.f32 %v1060, 0.0
        %v1151 = vmax.f32 %v1062, 0.0
        %v1152 = vmax.f32 %v1066, 0.0
        %v1153 = vmax.f32 %v1068, 0.0
        %v1154 = vmax.f32 %v1070, 0.0
        %v1155 = vmax.f32 %v1072, 0.0
        %v1156 = vmax.f32 %v1076, 0.0
        %v1157 = vmax.f32 %v1078, 0.0
        %v1158 = vmax.f32 %v1080, 0.0
        %v1159 = vmax.f32 %v1082, 0.0
        %v1160 = vmax.f32 %v1086, 0.0
        %v1161 = vmax.f32 %v1088, 0.0
        %v1162 = vmax.f32 %v1090, 0.0
        %v1163 = vmax.f32 %v1092, 0.0
        %v1164 = vmax.f32 %v1096, 0.0
        %v1165 = vmax.f32 %v1098, 0.0
        %v1166 = vmax.f32 %v1100, 0.0
        %v1167 = vmax.f32 %v1102, 0.0
        %v1168 = vpack.c.bf16 %v1106, %v1104
        %v1169 = vpack.c.bf16 %v1107, %v1105
        %v1170 = vpack.c.bf16 %v1110, %v1108
        %v1171 = vpack.c.bf16 %v1111, %v1109
        %v1172 = vpack.c.bf16 %v1114, %v1112
        %v1173 = vpack.c.bf16 %v1115, %v1113
        %v1174 = vpack.c.bf16 %v1118, %v1116
        %v1175 = vpack.c.bf16 %v1119, %v1117
        %v1176 = vpack.c.bf16 %v1122, %v1120
        %v1177 = vpack.c.bf16 %v1123, %v1121
        %v1178 = vpack.c.bf16 %v1126, %v1124
        %v1179 = vpack.c.bf16 %v1127, %v1125
        %v1180 = vpack.c.bf16 %v1130, %v1128
        %v1181 = vpack.c.bf16 %v1131, %v1129
        %v1182 = vpack.c.bf16 %v1134, %v1132
        %v1183 = vpack.c.bf16 %v1135, %v1133
        %v1184 = vpack.c.bf16 %v1138, %v1136
        %v1185 = vpack.c.bf16 %v1139, %v1137
        %v1186 = vpack.c.bf16 %v1142, %v1140
        %v1187 = vpack.c.bf16 %v1143, %v1141
        %v1188 = vpack.c.bf16 %v1146, %v1144
        %v1189 = vpack.c.bf16 %v1147, %v1145
        %v1190 = vpack.c.bf16 %v1150, %v1148
        %v1191 = vpack.c.bf16 %v1151, %v1149
        %v1192 = vpack.c.bf16 %v1154, %v1152
        %v1193 = vpack.c.bf16 %v1155, %v1153
        %v1194 = vpack.c.bf16 %v1158, %v1156
        %v1195 = vpack.c.bf16 %v1159, %v1157
        %v1196 = vpack.c.bf16 %v1162, %v1160
        %v1197 = vpack.c.bf16 %v1163, %v1161
        %v1198 = vpack.c.bf16 %v1166, %v1164
        %v1199 = vpack.c.bf16 %v1167, %v1165
        %v1200 = vld [vmem:[%s5] sm:$0xff]
        %v1201 = vld [vmem:[%s5 + $0x8] sm:$0xf]
        %v1202 = vld [vmem:[%s5 + $0xc] sm:$0xff]
        %v1203 = vld [vmem:[%s5 + $0x14] sm:$0xf]
        %v1204 = vld [vmem:[%s5 + $0x18] sm:$0xff]
        %v1205 = vld [vmem:[%s5 + $0x20] sm:$0xf]
        %v1206 = vld [vmem:[%s5 + $0x24] sm:$0xff]
        %v1207 = vld [vmem:[%s5 + $0x2c] sm:$0xf]
        %v1208 = vld [vmem:[%s5 + $0x30] sm:$0xff]
        %v1209 = vld [vmem:[%s5 + $0x38] sm:$0xf]
        %v1210 = vld [vmem:[%s5 + $0x3c] sm:$0xff]
        %v1211 = vld [vmem:[%s5 + $0x44] sm:$0xf]
        %v1212 = vld [vmem:[%s5 + $0x48] sm:$0xff]
        %v1213 = vld [vmem:[%s5 + $0x50] sm:$0xf]
        %v1214 = vld [vmem:[%s5 + $0x54] sm:$0xff]
        %v1215 = vld [vmem:[%s5 + $0x5c] sm:$0xf]
        %v1216 = vld [vmem:[%s5 + $0x60] sm:$0xff]
        %v1217 = vld [vmem:[%s5 + $0x68] sm:$0xf]
        %v1218 = vld [vmem:[%s5 + $0x6c] sm:$0xff]
        %v1219 = vld [vmem:[%s5 + $0x74] sm:$0xf]
        %v1220 = vld [vmem:[%s5 + $0x78] sm:$0xff]
        %v1221 = vld [vmem:[%s5 + $0x80] sm:$0xf]
        %v1222 = vld [vmem:[%s5 + $0x84] sm:$0xff]
        %v1223 = vld [vmem:[%s5 + $0x8c] sm:$0xf]
        %v1224 = vld [vmem:[%s5 + $0x90] sm:$0xff]
        %v1225 = vld [vmem:[%s5 + $0x98] sm:$0xf]
        %v1226 = vld [vmem:[%s5 + $0x9c] sm:$0xff]
        %v1227 = vld [vmem:[%s5 + $0xa4] sm:$0xf]
        %v1228 = vld [vmem:[%s5 + $0xa8] sm:$0xff]
        %v1229 = vld [vmem:[%s5 + $0xb0] sm:$0xf]
        %v1230 = vld [vmem:[%s5 + $0xb4] sm:$0xff]
        %v1231 = vld [vmem:[%s5 + $0xbc] sm:$0xf]
        %v1232 = vld [vmem:[%s5 + $0xc0] sm:$0xff]
        %v1233 = vld [vmem:[%s5 + $0xc8] sm:$0xf]
        %v1234 = vld [vmem:[%s5 + $0xcc] sm:$0xff]
        %v1235 = vld [vmem:[%s5 + $0xd4] sm:$0xf]
        %v1236 = vld [vmem:[%s5 + $0xd8] sm:$0xff]
        %v1237 = vld [vmem:[%s5 + $0xe0] sm:$0xf]
        %v1238 = vld [vmem:[%s5 + $0xe4] sm:$0xff]
        %v1239 = vld [vmem:[%s5 + $0xec] sm:$0xf]
        %v1240 = vld [vmem:[%s5 + $0xf0] sm:$0xff]
        %v1241 = vld [vmem:[%s5 + $0xf8] sm:$0xf]
        %v1242 = vld [vmem:[%s5 + $0xfc] sm:$0xff]
        %v1243 = vld [vmem:[%s5 + $0x104] sm:$0xf]
        %v1244 = vld [vmem:[%s5 + $0x108] sm:$0xff]
        %v1245 = vld [vmem:[%s5 + $0x110] sm:$0xf]
        %v1246 = vld [vmem:[%s5 + $0x114] sm:$0xff]
        %v1247 = vld [vmem:[%s5 + $0x11c] sm:$0xf]
        %v1248 = vld [vmem:[%s5 + $0x120] sm:$0xff]
        %v1249 = vld [vmem:[%s5 + $0x128] sm:$0xf]
        %v1250 = vld [vmem:[%s5 + $0x12c] sm:$0xff]
        %v1251 = vld [vmem:[%s5 + $0x134] sm:$0xf]
        %v1252 = vld [vmem:[%s5 + $0x138] sm:$0xff]
        %v1253 = vld [vmem:[%s5 + $0x140] sm:$0xf]
        %v1254 = vld [vmem:[%s5 + $0x144] sm:$0xff]
        %v1255 = vld [vmem:[%s5 + $0x14c] sm:$0xf]
        %v1256 = vld [vmem:[%s5 + $0x150] sm:$0xff]
        %v1257 = vld [vmem:[%s5 + $0x158] sm:$0xf]
        %v1258 = vld [vmem:[%s5 + $0x15c] sm:$0xff]
        %v1259 = vld [vmem:[%s5 + $0x164] sm:$0xf]
        %v1260 = vld [vmem:[%s5 + $0x168] sm:$0xff]
        %v1261 = vld [vmem:[%s5 + $0x170] sm:$0xf]
        %v1262 = vld [vmem:[%s5 + $0x174] sm:$0xff]
        %v1263 = vld [vmem:[%s5 + $0x17c] sm:$0xf]
        %v1264 = vld [vmem:[%s6] sm:$0x7]
        %v1266 = vlaneseq
        %v1267 = vshrl.u32 %v1266, 7
        %v1268 = vsub.s32 0, %v1267
        %v1269 = vrot.slane %v1264, %v1268
        %v1270 = vlaneseq
        %v1271 = vshrl.u32 %v1270, 7
        %v1272 = vsub.s32 1, %v1271
        %v1273 = vrot.slane %v1264, %v1272
        %v1274 = vlaneseq
        %v1275 = vshrl.u32 %v1274, 7
        %v1276 = vsub.s32 2, %v1275
        %v1277 = vrot.slane %v1264, %v1276
        %v1345 = vunpack.c.l.b16 %v1200
        %v1346 = vunpack.c.h.b16 %v1200
        %v1347 = vunpack.c.l.b16 %v1201
        %v1348 = vunpack.c.l.b16 %v1202
        %v1349 = vunpack.c.h.b16 %v1202
        %v1350 = vunpack.c.l.b16 %v1203
        %v1351 = vunpack.c.l.b16 %v1204
        %v1352 = vunpack.c.h.b16 %v1204
        %v1353 = vunpack.c.l.b16 %v1205
        %v1354 = vunpack.c.l.b16 %v1206
        %v1355 = vunpack.c.h.b16 %v1206
        %v1356 = vunpack.c.l.b16 %v1207
        %v1357 = vunpack.c.l.b16 %v1208
        %v1358 = vunpack.c.h.b16 %v1208
        %v1359 = vunpack.c.l.b16 %v1209
        %v1360 = vunpack.c.l.b16 %v1210
        %v1361 = vunpack.c.h.b16 %v1210
        %v1362 = vunpack.c.l.b16 %v1211
        %v1363 = vunpack.c.l.b16 %v1212
        %v1364 = vunpack.c.h.b16 %v1212
        %v1365 = vunpack.c.l.b16 %v1213
        %v1366 = vunpack.c.l.b16 %v1214
        %v1367 = vunpack.c.h.b16 %v1214
        %v1368 = vunpack.c.l.b16 %v1215
        %v1369 = vunpack.c.l.b16 %v1216
        %v1370 = vunpack.c.h.b16 %v1216
        %v1371 = vunpack.c.l.b16 %v1217
        %v1372 = vunpack.c.l.b16 %v1218
        %v1373 = vunpack.c.h.b16 %v1218
        %v1374 = vunpack.c.l.b16 %v1219
        %v1375 = vunpack.c.l.b16 %v1220
        %v1376 = vunpack.c.h.b16 %v1220
        %v1377 = vunpack.c.l.b16 %v1221
        %v1378 = vunpack.c.l.b16 %v1222
        %v1379 = vunpack.c.h.b16 %v1222
        %v1380 = vunpack.c.l.b16 %v1223
        %v1381 = vunpack.c.l.b16 %v1224
        %v1382 = vunpack.c.h.b16 %v1224
        %v1383 = vunpack.c.l.b16 %v1225
        %v1384 = vunpack.c.l.b16 %v1226
        %v1385 = vunpack.c.h.b16 %v1226
        %v1386 = vunpack.c.l.b16 %v1227
        %v1387 = vunpack.c.l.b16 %v1228
        %v1388 = vunpack.c.h.b16 %v1228
        %v1389 = vunpack.c.l.b16 %v1229
        %v1390 = vunpack.c.l.b16 %v1230
        %v1391 = vunpack.c.h.b16 %v1230
        %v1392 = vunpack.c.l.b16 %v1231
        %v1393 = vunpack.c.l.b16 %v1232
        %v1394 = vunpack.c.h.b16 %v1232
        %v1395 = vunpack.c.l.b16 %v1233
        %v1396 = vunpack.c.l.b16 %v1234
        %v1397 = vunpack.c.h.b16 %v1234
        %v1398 = vunpack.c.l.b16 %v1235
        %v1399 = vunpack.c.l.b16 %v1236
        %v1400 = vunpack.c.h.b16 %v1236
        %v1401 = vunpack.c.l.b16 %v1237
        %v1402 = vunpack.c.l.b16 %v1238
        %v1403 = vunpack.c.h.b16 %v1238
        %v1404 = vunpack.c.l.b16 %v1239
        %v1405 = vunpack.c.l.b16 %v1240
        %v1406 = vunpack.c.h.b16 %v1240
        %v1407 = vunpack.c.l.b16 %v1241
        %v1408 = vunpack.c.l.b16 %v1242
        %v1409 = vunpack.c.h.b16 %v1242
        %v1410 = vunpack.c.l.b16 %v1243
        %v1411 = vunpack.c.l.b16 %v1244
        %v1412 = vunpack.c.h.b16 %v1244
        %v1413 = vunpack.c.l.b16 %v1245
        %v1414 = vunpack.c.l.b16 %v1246
        %v1415 = vunpack.c.h.b16 %v1246
        %v1416 = vunpack.c.l.b16 %v1247
        %v1417 = vunpack.c.l.b16 %v1248
        %v1418 = vunpack.c.h.b16 %v1248
        %v1419 = vunpack.c.l.b16 %v1249
        %v1420 = vunpack.c.l.b16 %v1250
        %v1421 = vunpack.c.h.b16 %v1250
        %v1422 = vunpack.c.l.b16 %v1251
        %v1423 = vunpack.c.l.b16 %v1252
        %v1424 = vunpack.c.h.b16 %v1252
        %v1425 = vunpack.c.l.b16 %v1253
        %v1426 = vunpack.c.l.b16 %v1254
        %v1427 = vunpack.c.h.b16 %v1254
        %v1428 = vunpack.c.l.b16 %v1255
        %v1429 = vunpack.c.l.b16 %v1256
        %v1430 = vunpack.c.h.b16 %v1256
        %v1431 = vunpack.c.l.b16 %v1257
        %v1432 = vunpack.c.l.b16 %v1258
        %v1433 = vunpack.c.h.b16 %v1258
        %v1434 = vunpack.c.l.b16 %v1259
        %v1435 = vunpack.c.l.b16 %v1260
        %v1436 = vunpack.c.h.b16 %v1260
        %v1437 = vunpack.c.l.b16 %v1261
        %v1438 = vunpack.c.l.b16 %v1262
        %v1439 = vunpack.c.h.b16 %v1262
        %v1440 = vunpack.c.l.b16 %v1263
        %v1441 = vpack.c.b16 %v1348, %v1345
        %v1442 = vpack.c.b16 %v1349, %v1346
        %v1443 = vpack.c.b16 %v1350, %v1347
        %v1444 = vpack.c.b16 %v1354, %v1351
        %v1445 = vpack.c.b16 %v1355, %v1352
        %v1446 = vpack.c.b16 %v1356, %v1353
        %v1447 = vpack.c.b16 %v1360, %v1357
        %v1448 = vpack.c.b16 %v1361, %v1358
        %v1449 = vpack.c.b16 %v1362, %v1359
        %v1450 = vpack.c.b16 %v1366, %v1363
        %v1451 = vpack.c.b16 %v1367, %v1364
        %v1452 = vpack.c.b16 %v1368, %v1365
        %v1453 = vpack.c.b16 %v1372, %v1369
        %v1454 = vpack.c.b16 %v1373, %v1370
        %v1455 = vpack.c.b16 %v1374, %v1371
        %v1456 = vpack.c.b16 %v1378, %v1375
        %v1457 = vpack.c.b16 %v1379, %v1376
        %v1458 = vpack.c.b16 %v1380, %v1377
        %v1459 = vpack.c.b16 %v1384, %v1381
        %v1460 = vpack.c.b16 %v1385, %v1382
        %v1461 = vpack.c.b16 %v1386, %v1383
        %v1462 = vpack.c.b16 %v1390, %v1387
        %v1463 = vpack.c.b16 %v1391, %v1388
        %v1464 = vpack.c.b16 %v1392, %v1389
        %v1465 = vpack.c.b16 %v1396, %v1393
        %v1466 = vpack.c.b16 %v1397, %v1394
        %v1467 = vpack.c.b16 %v1398, %v1395
        %v1468 = vpack.c.b16 %v1402, %v1399
        %v1469 = vpack.c.b16 %v1403, %v1400
        %v1470 = vpack.c.b16 %v1404, %v1401
        %v1471 = vpack.c.b16 %v1408, %v1405
        %v1472 = vpack.c.b16 %v1409, %v1406
        %v1473 = vpack.c.b16 %v1410, %v1407
        %v1474 = vpack.c.b16 %v1414, %v1411
        %v1475 = vpack.c.b16 %v1415, %v1412
        %v1476 = vpack.c.b16 %v1416, %v1413
        %v1477 = vpack.c.b16 %v1420, %v1417
        %v1478 = vpack.c.b16 %v1421, %v1418
        %v1479 = vpack.c.b16 %v1422, %v1419
        %v1480 = vpack.c.b16 %v1426, %v1423
        %v1481 = vpack.c.b16 %v1427, %v1424
        %v1482 = vpack.c.b16 %v1428, %v1425
        %v1483 = vpack.c.b16 %v1432, %v1429
        %v1484 = vpack.c.b16 %v1433, %v1430
        %v1485 = vpack.c.b16 %v1434, %v1431
        %v1486 = vpack.c.b16 %v1438, %v1435
        %v1487 = vpack.c.b16 %v1439, %v1436
        %v1488 = vpack.c.b16 %v1440, %v1437
        %1537 = vmatprep.subr.bf16.mxu0 %v1463
        %1538 = vmatpush1.bf16.msra.mxu0 %v1462
        %1539 = vmatprep.subr.bf16.mxu0 %v1460
        %1540 = vmatpush1.bf16.msra.mxu0 %v1459
        %1541 = vmatprep.subr.bf16.mxu0 %v1457
        %1542 = vmatpush1.bf16.msra.mxu0 %v1456
        %1543 = vmatprep.subr.bf16.mxu0 %v1454
        %1544 = vmatpush1.bf16.msra.mxu0 %v1453
        %1545 = vmatprep.subr.bf16.mxu0 %v1451
        %1546 = vmatpush1.bf16.msra.mxu0 %v1450
        %1547 = vmatprep.subr.bf16.mxu0 %v1448
        %1548 = vmatpush1.bf16.msra.mxu0 %v1447
        %1549 = vmatprep.subr.bf16.mxu0 %v1445
        %1550 = vmatpush1.bf16.msra.mxu0 %v1444
        %1551 = vmatprep.subr.bf16.mxu0 %v1442
        %1552 = vmatpush1.bf16.msra.mxu0 %v1441
        %1553 = vmatprep.subr.bf16.mxu0 %v1487
        %1554 = vmatpush2.bf16.msra.mxu0 %v1486
        %1555 = vmatprep.subr.bf16.mxu0 %v1484
        %1556 = vmatpush2.bf16.msra.mxu0 %v1483
        %1557 = vmatprep.subr.bf16.mxu0 %v1481
        %1558 = vmatpush2.bf16.msra.mxu0 %v1480
        %1559 = vmatprep.subr.bf16.mxu0 %v1478
        %1560 = vmatpush2.bf16.msra.mxu0 %v1477
        %1561 = vmatprep.subr.bf16.mxu0 %v1475
        %1562 = vmatpush2.bf16.msra.mxu0 %v1474
        %1563 = vmatprep.subr.bf16.mxu0 %v1472
        %1564 = vmatpush2.bf16.msra.mxu0 %v1471
        %1565 = vmatprep.subr.bf16.mxu0 %v1469
        %1566 = vmatpush2.bf16.msra.mxu0 %v1468
        %1567 = vmatprep.subr.bf16.mxu0 %v1466
        %1568 = vmatpush2.bf16.msra.mxu0 %v1465
        %1569 = vmatprep.mubr.bf16.mxu0 %v1169
        %1570 = vmatmul.mubr.bf16.gmra.mxu0 %v1168
        %v1571 = vpop.f32.mrf.mxu0
        %v1572 = vadd.f32 %v1269, %v1571
        %v1573 = vpop.f32.mrf.mxu0
        %v1574 = vadd.f32 %v1273, %v1573
        %v1575 = vpop.f32.mrf.mxu0
        %v1576 = vadd.f32 %v1269, %v1575
        %v1577 = vpop.f32.mrf.mxu0
        %v1578 = vadd.f32 %v1273, %v1577
        %1579 = vmatprep.mubr.bf16.mxu0 %v1171
        %1580 = vmatmul.mubr.bf16.gmra.mxu0 %v1170
        %v1581 = vpop.f32.mrf.mxu0
        %v1582 = vadd.f32 %v1269, %v1581
        %v1583 = vpop.f32.mrf.mxu0
        %v1584 = vadd.f32 %v1273, %v1583
        %v1585 = vpop.f32.mrf.mxu0
        %v1586 = vadd.f32 %v1269, %v1585
        %v1587 = vpop.f32.mrf.mxu0
        %v1588 = vadd.f32 %v1273, %v1587
        %1589 = vmatprep.mubr.bf16.mxu0 %v1173
        %1590 = vmatmul.mubr.bf16.gmra.mxu0 %v1172
        %v1591 = vpop.f32.mrf.mxu0
        %v1592 = vadd.f32 %v1269, %v1591
        %v1593 = vpop.f32.mrf.mxu0
        %v1594 = vadd.f32 %v1273, %v1593
        %v1595 = vpop.f32.mrf.mxu0
        %v1596 = vadd.f32 %v1269, %v1595
        %v1597 = vpop.f32.mrf.mxu0
        %v1598 = vadd.f32 %v1273, %v1597
        %1599 = vmatprep.mubr.bf16.mxu0 %v1175
        %1600 = vmatmul.mubr.bf16.gmra.mxu0 %v1174
        %v1601 = vpop.f32.mrf.mxu0
        %v1602 = vadd.f32 %v1269, %v1601
        %v1603 = vpop.f32.mrf.mxu0
        %v1604 = vadd.f32 %v1273, %v1603
        %v1605 = vpop.f32.mrf.mxu0
        %v1606 = vadd.f32 %v1269, %v1605
        %v1607 = vpop.f32.mrf.mxu0
        %v1608 = vadd.f32 %v1273, %v1607
        %1609 = vmatprep.mubr.bf16.mxu0 %v1177
        %1610 = vmatmul.mubr.bf16.gmra.mxu0 %v1176
        %v1611 = vpop.f32.mrf.mxu0
        %v1612 = vadd.f32 %v1269, %v1611
        %v1613 = vpop.f32.mrf.mxu0
        %v1614 = vadd.f32 %v1273, %v1613
        %v1615 = vpop.f32.mrf.mxu0
        %v1616 = vadd.f32 %v1269, %v1615
        %v1617 = vpop.f32.mrf.mxu0
        %v1618 = vadd.f32 %v1273, %v1617
        %1619 = vmatprep.mubr.bf16.mxu0 %v1179
        %1620 = vmatmul.mubr.bf16.gmra.mxu0 %v1178
        %v1621 = vpop.f32.mrf.mxu0
        %v1622 = vadd.f32 %v1269, %v1621
        %v1623 = vpop.f32.mrf.mxu0
        %v1624 = vadd.f32 %v1273, %v1623
        %v1625 = vpop.f32.mrf.mxu0
        %v1626 = vadd.f32 %v1269, %v1625
        %v1627 = vpop.f32.mrf.mxu0
        %v1628 = vadd.f32 %v1273, %v1627
        %1629 = vmatprep.mubr.bf16.mxu0 %v1181
        %1630 = vmatmul.mubr.bf16.gmra.mxu0 %v1180
        %v1631 = vpop.f32.mrf.mxu0
        %v1632 = vadd.f32 %v1269, %v1631
        %v1633 = vpop.f32.mrf.mxu0
        %v1634 = vadd.f32 %v1273, %v1633
        %v1635 = vpop.f32.mrf.mxu0
        %v1636 = vadd.f32 %v1269, %v1635
        %v1637 = vpop.f32.mrf.mxu0
        %v1638 = vadd.f32 %v1273, %v1637
        %1639 = vmatprep.mubr.bf16.mxu0 %v1183
        %1640 = vmatmul.mubr.bf16.gmra.mxu0 %v1182
        %v1641 = vpop.f32.mrf.mxu0
        %v1642 = vadd.f32 %v1269, %v1641
        %v1643 = vpop.f32.mrf.mxu0
        %v1644 = vadd.f32 %v1273, %v1643
        %v1645 = vpop.f32.mrf.mxu0
        %v1646 = vadd.f32 %v1269, %v1645
        %v1647 = vpop.f32.mrf.mxu0
        %v1648 = vadd.f32 %v1273, %v1647
        %1649 = vmatprep.mubr.bf16.mxu0 %v1185
        %1650 = vmatmul.mubr.bf16.gmra.mxu0 %v1184
        %v1651 = vpop.f32.mrf.mxu0
        %v1652 = vadd.f32 %v1269, %v1651
        %v1653 = vpop.f32.mrf.mxu0
        %v1654 = vadd.f32 %v1273, %v1653
        %v1655 = vpop.f32.mrf.mxu0
        %v1656 = vadd.f32 %v1269, %v1655
        %v1657 = vpop.f32.mrf.mxu0
        %v1658 = vadd.f32 %v1273, %v1657
        %1659 = vmatprep.mubr.bf16.mxu0 %v1187
        %1660 = vmatmul.mubr.bf16.gmra.mxu0 %v1186
        %v1661 = vpop.f32.mrf.mxu0
        %v1662 = vadd.f32 %v1269, %v1661
        %v1663 = vpop.f32.mrf.mxu0
        %v1664 = vadd.f32 %v1273, %v1663
        %v1665 = vpop.f32.mrf.mxu0
        %v1666 = vadd.f32 %v1269, %v1665
        %v1667 = vpop.f32.mrf.mxu0
        %v1668 = vadd.f32 %v1273, %v1667
        %1669 = vmatprep.mubr.bf16.mxu0 %v1189
        %1670 = vmatmul.mubr.bf16.gmra.mxu0 %v1188
        %v1671 = vpop.f32.mrf.mxu0
        %v1672 = vadd.f32 %v1269, %v1671
        %v1673 = vpop.f32.mrf.mxu0
        %v1674 = vadd.f32 %v1273, %v1673
        %v1675 = vpop.f32.mrf.mxu0
        %v1676 = vadd.f32 %v1269, %v1675
        %v1677 = vpop.f32.mrf.mxu0
        %v1678 = vadd.f32 %v1273, %v1677
        %1679 = vmatprep.mubr.bf16.mxu0 %v1191
        %1680 = vmatmul.mubr.bf16.gmra.mxu0 %v1190
        %v1681 = vpop.f32.mrf.mxu0
        %v1682 = vadd.f32 %v1269, %v1681
        %v1683 = vpop.f32.mrf.mxu0
        %v1684 = vadd.f32 %v1273, %v1683
        %v1685 = vpop.f32.mrf.mxu0
        %v1686 = vadd.f32 %v1269, %v1685
        %v1687 = vpop.f32.mrf.mxu0
        %v1688 = vadd.f32 %v1273, %v1687
        %1689 = vmatprep.mubr.bf16.mxu0 %v1193
        %1690 = vmatmul.mubr.bf16.gmra.mxu0 %v1192
        %v1691 = vpop.f32.mrf.mxu0
        %v1692 = vadd.f32 %v1269, %v1691
        %v1693 = vpop.f32.mrf.mxu0
        %v1694 = vadd.f32 %v1273, %v1693
        %v1695 = vpop.f32.mrf.mxu0
        %v1696 = vadd.f32 %v1269, %v1695
        %v1697 = vpop.f32.mrf.mxu0
        %v1698 = vadd.f32 %v1273, %v1697
        %1699 = vmatprep.mubr.bf16.mxu0 %v1195
        %1700 = vmatmul.mubr.bf16.gmra.mxu0 %v1194
        %v1701 = vpop.f32.mrf.mxu0
        %v1702 = vadd.f32 %v1269, %v1701
        %v1703 = vpop.f32.mrf.mxu0
        %v1704 = vadd.f32 %v1273, %v1703
        %v1705 = vpop.f32.mrf.mxu0
        %v1706 = vadd.f32 %v1269, %v1705
        %v1707 = vpop.f32.mrf.mxu0
        %v1708 = vadd.f32 %v1273, %v1707
        %1709 = vmatprep.mubr.bf16.mxu0 %v1197
        %1710 = vmatmul.mubr.bf16.gmra.mxu0 %v1196
        %v1711 = vpop.f32.mrf.mxu0
        %v1712 = vadd.f32 %v1269, %v1711
        %v1713 = vpop.f32.mrf.mxu0
        %v1714 = vadd.f32 %v1273, %v1713
        %v1715 = vpop.f32.mrf.mxu0
        %v1716 = vadd.f32 %v1269, %v1715
        %v1717 = vpop.f32.mrf.mxu0
        %v1718 = vadd.f32 %v1273, %v1717
        %1719 = vmatprep.mubr.bf16.mxu0 %v1199
        %1720 = vmatmul.mubr.bf16.gmra.mxu0 %v1198
        %v1721 = vpop.f32.mrf.mxu0
        %v1722 = vadd.f32 %v1269, %v1721
        %v1723 = vpop.f32.mrf.mxu0
        %v1724 = vadd.f32 %v1273, %v1723
        %v1725 = vpop.f32.mrf.mxu0
        %v1726 = vadd.f32 %v1269, %v1725
        %v1727 = vpop.f32.mrf.mxu0
        %v1728 = vadd.f32 %v1273, %v1727
        %1729 = vdwg.mxu0
        %1730 = vmatprep.subr.bf16.mxu0 0
        %1731 = vmatpush1.bf16.msra.mxu0 %v1464
        %1732 = vmatprep.subr.bf16.mxu0 0
        %1733 = vmatpush1.bf16.msra.mxu0 %v1461
        %1734 = vmatprep.subr.bf16.mxu0 0
        %1735 = vmatpush1.bf16.msra.mxu0 %v1458
        %1736 = vmatprep.subr.bf16.mxu0 0
        %1737 = vmatpush1.bf16.msra.mxu0 %v1455
        %1738 = vmatprep.subr.bf16.mxu0 0
        %1739 = vmatpush1.bf16.msra.mxu0 %v1452
        %1740 = vmatprep.subr.bf16.mxu0 0
        %1741 = vmatpush1.bf16.msra.mxu0 %v1449
        %1742 = vmatprep.subr.bf16.mxu0 0
        %1743 = vmatpush1.bf16.msra.mxu0 %v1446
        %1744 = vmatprep.subr.bf16.mxu0 0
        %1745 = vmatpush1.bf16.msra.mxu0 %v1443
        %1746 = vmatprep.subr.bf16.mxu0 0
        %1747 = vmatpush2.bf16.msra.mxu0 %v1488
        %1748 = vmatprep.subr.bf16.mxu0 0
        %1749 = vmatpush2.bf16.msra.mxu0 %v1485
        %1750 = vmatprep.subr.bf16.mxu0 0
        %1751 = vmatpush2.bf16.msra.mxu0 %v1482
        %1752 = vmatprep.subr.bf16.mxu0 0
        %1753 = vmatpush2.bf16.msra.mxu0 %v1479
        %1754 = vmatprep.subr.bf16.mxu0 0
        %1755 = vmatpush2.bf16.msra.mxu0 %v1476
        %1756 = vmatprep.subr.bf16.mxu0 0
        %1757 = vmatpush2.bf16.msra.mxu0 %v1473
        %1758 = vmatprep.subr.bf16.mxu0 0
        %1759 = vmatpush2.bf16.msra.mxu0 %v1470
        %1760 = vmatprep.subr.bf16.mxu0 0
        %1761 = vmatpush2.bf16.msra.mxu0 %v1467
        %1762 = vmatprep.mubr.bf16.mxu0 %v1169
        %1763 = vmatmul.mubr.bf16.gmra.mxu0 %v1168
        %v1764 = vpop.f32.mrf.mxu0
        %v1765 = vadd.f32 %v1277, %v1764
        %v1766 = vpop.f32.mrf.mxu0
        %v1767 = vpop.f32.mrf.mxu0
        %v1768 = vadd.f32 %v1277, %v1767
        %v1769 = vpop.f32.mrf.mxu0
        %1770 = vmatprep.mubr.bf16.mxu0 %v1171
        %1771 = vmatmul.mubr.bf16.gmra.mxu0 %v1170
        %v1772 = vpop.f32.mrf.mxu0
        %v1773 = vadd.f32 %v1277, %v1772
        %v1774 = vpop.f32.mrf.mxu0
        %v1775 = vpop.f32.mrf.mxu0
        %v1776 = vadd.f32 %v1277, %v1775
        %v1777 = vpop.f32.mrf.mxu0
        %1778 = vmatprep.mubr.bf16.mxu0 %v1173
        %1779 = vmatmul.mubr.bf16.gmra.mxu0 %v1172
        %v1780 = vpop.f32.mrf.mxu0
        %v1781 = vadd.f32 %v1277, %v1780
        %v1782 = vpop.f32.mrf.mxu0
        %v1783 = vpop.f32.mrf.mxu0
        %v1784 = vadd.f32 %v1277, %v1783
        %v1785 = vpop.f32.mrf.mxu0
        %1786 = vmatprep.mubr.bf16.mxu0 %v1175
        %1787 = vmatmul.mubr.bf16.gmra.mxu0 %v1174
        %v1788 = vpop.f32.mrf.mxu0
        %v1789 = vadd.f32 %v1277, %v1788
        %v1790 = vpop.f32.mrf.mxu0
        %v1791 = vpop.f32.mrf.mxu0
        %v1792 = vadd.f32 %v1277, %v1791
        %v1793 = vpop.f32.mrf.mxu0
        %1794 = vmatprep.mubr.bf16.mxu0 %v1177
        %1795 = vmatmul.mubr.bf16.gmra.mxu0 %v1176
        %v1796 = vpop.f32.mrf.mxu0
        %v1797 = vadd.f32 %v1277, %v1796
        %v1798 = vpop.f32.mrf.mxu0
        %v1799 = vpop.f32.mrf.mxu0
        %v1800 = vadd.f32 %v1277, %v1799
        %v1801 = vpop.f32.mrf.mxu0
        %1802 = vmatprep.mubr.bf16.mxu0 %v1179
        %1803 = vmatmul.mubr.bf16.gmra.mxu0 %v1178
        %v1804 = vpop.f32.mrf.mxu0
        %v1805 = vadd.f32 %v1277, %v1804
        %v1806 = vpop.f32.mrf.mxu0
        %v1807 = vpop.f32.mrf.mxu0
        %v1808 = vadd.f32 %v1277, %v1807
        %v1809 = vpop.f32.mrf.mxu0
        %1810 = vmatprep.mubr.bf16.mxu0 %v1181
        %1811 = vmatmul.mubr.bf16.gmra.mxu0 %v1180
        %v1812 = vpop.f32.mrf.mxu0
        %v1813 = vadd.f32 %v1277, %v1812
        %v1814 = vpop.f32.mrf.mxu0
        %v1815 = vpop.f32.mrf.mxu0
        %v1816 = vadd.f32 %v1277, %v1815
        %v1817 = vpop.f32.mrf.mxu0
        %1818 = vmatprep.mubr.bf16.mxu0 %v1183
        %1819 = vmatmul.mubr.bf16.gmra.mxu0 %v1182
        %v1820 = vpop.f32.mrf.mxu0
        %v1821 = vadd.f32 %v1277, %v1820
        %v1822 = vpop.f32.mrf.mxu0
        %v1823 = vpop.f32.mrf.mxu0
        %v1824 = vadd.f32 %v1277, %v1823
        %v1825 = vpop.f32.mrf.mxu0
        %1826 = vmatprep.mubr.bf16.mxu0 %v1185
        %1827 = vmatmul.mubr.bf16.gmra.mxu0 %v1184
        %v1828 = vpop.f32.mrf.mxu0
        %v1829 = vadd.f32 %v1277, %v1828
        %v1830 = vpop.f32.mrf.mxu0
        %v1831 = vpop.f32.mrf.mxu0
        %v1832 = vadd.f32 %v1277, %v1831
        %v1833 = vpop.f32.mrf.mxu0
        %1834 = vmatprep.mubr.bf16.mxu0 %v1187
        %1835 = vmatmul.mubr.bf16.gmra.mxu0 %v1186
        %v1836 = vpop.f32.mrf.mxu0
        %v1837 = vadd.f32 %v1277, %v1836
        %v1838 = vpop.f32.mrf.mxu0
        %v1839 = vpop.f32.mrf.mxu0
        %v1840 = vadd.f32 %v1277, %v1839
        %v1841 = vpop.f32.mrf.mxu0
        %1842 = vmatprep.mubr.bf16.mxu0 %v1189
        %1843 = vmatmul.mubr.bf16.gmra.mxu0 %v1188
        %v1844 = vpop.f32.mrf.mxu0
        %v1845 = vadd.f32 %v1277, %v1844
        %v1846 = vpop.f32.mrf.mxu0
        %v1847 = vpop.f32.mrf.mxu0
        %v1848 = vadd.f32 %v1277, %v1847
        %v1849 = vpop.f32.mrf.mxu0
        %1850 = vmatprep.mubr.bf16.mxu0 %v1191
        %1851 = vmatmul.mubr.bf16.gmra.mxu0 %v1190
        %v1852 = vpop.f32.mrf.mxu0
        %v1853 = vadd.f32 %v1277, %v1852
        %v1854 = vpop.f32.mrf.mxu0
        %v1855 = vpop.f32.mrf.mxu0
        %v1856 = vadd.f32 %v1277, %v1855
        %v1857 = vpop.f32.mrf.mxu0
        %1858 = vmatprep.mubr.bf16.mxu0 %v1193
        %1859 = vmatmul.mubr.bf16.gmra.mxu0 %v1192
        %v1860 = vpop.f32.mrf.mxu0
        %v1861 = vadd.f32 %v1277, %v1860
        %v1862 = vpop.f32.mrf.mxu0
        %v1863 = vpop.f32.mrf.mxu0
        %v1864 = vadd.f32 %v1277, %v1863
        %v1865 = vpop.f32.mrf.mxu0
        %1866 = vmatprep.mubr.bf16.mxu0 %v1195
        %1867 = vmatmul.mubr.bf16.gmra.mxu0 %v1194
        %v1868 = vpop.f32.mrf.mxu0
        %v1869 = vadd.f32 %v1277, %v1868
        %v1870 = vpop.f32.mrf.mxu0
        %v1871 = vpop.f32.mrf.mxu0
        %v1872 = vadd.f32 %v1277, %v1871
        %v1873 = vpop.f32.mrf.mxu0
        %1874 = vmatprep.mubr.bf16.mxu0 %v1197
        %1875 = vmatmul.mubr.bf16.gmra.mxu0 %v1196
        %v1876 = vpop.f32.mrf.mxu0
        %v1877 = vadd.f32 %v1277, %v1876
        %v1878 = vpop.f32.mrf.mxu0
        %v1879 = vpop.f32.mrf.mxu0
        %v1880 = vadd.f32 %v1277, %v1879
        %v1881 = vpop.f32.mrf.mxu0
        %1882 = vmatprep.mubr.bf16.mxu0 %v1199
        %1883 = vmatmul.mubr.bf16.gmra.mxu0 %v1198
        %v1884 = vpop.f32.mrf.mxu0
        %v1885 = vadd.f32 %v1277, %v1884
        %v1886 = vpop.f32.mrf.mxu0
        %v1887 = vpop.f32.mrf.mxu0
        %v1888 = vadd.f32 %v1277, %v1887
        %v1889 = vpop.f32.mrf.mxu0
        %1890 = vdwg.mxu0
        %1891 = vst [vmem:[%s287] sm:$0xff] %v1572
        %1892 = vst [vmem:[%s287 + $0x8] sm:$0xff] %v1574
        %1893 = vst [vmem:[%s287 + $0x10] sm:$0xff] %v1765
        %1894 = vst [vmem:[%s287 + $0x18] sm:$0xff] %v1576
        %1895 = vst [vmem:[%s287 + $0x20] sm:$0xff] %v1578
        %1896 = vst [vmem:[%s287 + $0x28] sm:$0xff] %v1768
        %1897 = vst [vmem:[%s287 + $0x30] sm:$0xff] %v1582
        %1898 = vst [vmem:[%s287 + $0x38] sm:$0xff] %v1584
        %1899 = vst [vmem:[%s287 + $0x40] sm:$0xff] %v1773
        %1900 = vst [vmem:[%s287 + $0x48] sm:$0xff] %v1586
        %1901 = vst [vmem:[%s287 + $0x50] sm:$0xff] %v1588
        %1902 = vst [vmem:[%s287 + $0x58] sm:$0xff] %v1776
        %1903 = vst [vmem:[%s287 + $0x60] sm:$0xff] %v1592
        %1904 = vst [vmem:[%s287 + $0x68] sm:$0xff] %v1594
        %1905 = vst [vmem:[%s287 + $0x70] sm:$0xff] %v1781
        %1906 = vst [vmem:[%s287 + $0x78] sm:$0xff] %v1596
        %1907 = vst [vmem:[%s287 + $0x80] sm:$0xff] %v1598
        %1908 = vst [vmem:[%s287 + $0x88] sm:$0xff] %v1784
        %1909 = vst [vmem:[%s287 + $0x90] sm:$0xff] %v1602
        %1910 = vst [vmem:[%s287 + $0x98] sm:$0xff] %v1604
        %1911 = vst [vmem:[%s287 + $0xa0] sm:$0xff] %v1789
        %1912 = vst [vmem:[%s287 + $0xa8] sm:$0xff] %v1606
        %1913 = vst [vmem:[%s287 + $0xb0] sm:$0xff] %v1608
        %1914 = vst [vmem:[%s287 + $0xb8] sm:$0xff] %v1792
        %1915 = vst [vmem:[%s287 + $0xc0] sm:$0xff] %v1612
        %1916 = vst [vmem:[%s287 + $0xc8] sm:$0xff] %v1614
        %1917 = vst [vmem:[%s287 + $0xd0] sm:$0xff] %v1797
        %1918 = vst [vmem:[%s287 + $0xd8] sm:$0xff] %v1616
        %1919 = vst [vmem:[%s287 + $0xe0] sm:$0xff] %v1618
        %1920 = vst [vmem:[%s287 + $0xe8] sm:$0xff] %v1800
        %1921 = vst [vmem:[%s287 + $0xf0] sm:$0xff] %v1622
        %1922 = vst [vmem:[%s287 + $0xf8] sm:$0xff] %v1624
        %1923 = vst [vmem:[%s287 + $0x100] sm:$0xff] %v1805
        %1924 = vst [vmem:[%s287 + $0x108] sm:$0xff] %v1626
        %1925 = vst [vmem:[%s287 + $0x110] sm:$0xff] %v1628
        %1926 = vst [vmem:[%s287 + $0x118] sm:$0xff] %v1808
        %1927 = vst [vmem:[%s287 + $0x120] sm:$0xff] %v1632
        %1928 = vst [vmem:[%s287 + $0x128] sm:$0xff] %v1634
        %1929 = vst [vmem:[%s287 + $0x130] sm:$0xff] %v1813
        %1930 = vst [vmem:[%s287 + $0x138] sm:$0xff] %v1636
        %1931 = vst [vmem:[%s287 + $0x140] sm:$0xff] %v1638
        %1932 = vst [vmem:[%s287 + $0x148] sm:$0xff] %v1816
        %1933 = vst [vmem:[%s287 + $0x150] sm:$0xff] %v1642
        %1934 = vst [vmem:[%s287 + $0x158] sm:$0xff] %v1644
        %1935 = vst [vmem:[%s287 + $0x160] sm:$0xff] %v1821
        %1936 = vst [vmem:[%s287 + $0x168] sm:$0xff] %v1646
        %1937 = vst [vmem:[%s287 + $0x170] sm:$0xff] %v1648
        %1938 = vst [vmem:[%s287 + $0x178] sm:$0xff] %v1824
        %1939 = vst [vmem:[%s287 + $0x180] sm:$0xff] %v1652
        %1940 = vst [vmem:[%s287 + $0x188] sm:$0xff] %v1654
        %1941 = vst [vmem:[%s287 + $0x190] sm:$0xff] %v1829
        %1942 = vst [vmem:[%s287 + $0x198] sm:$0xff] %v1656
        %1943 = vst [vmem:[%s287 + $0x1a0] sm:$0xff] %v1658
        %1944 = vst [vmem:[%s287 + $0x1a8] sm:$0xff] %v1832
        %1945 = vst [vmem:[%s287 + $0x1b0] sm:$0xff] %v1662
        %1946 = vst [vmem:[%s287 + $0x1b8] sm:$0xff] %v1664
        %1947 = vst [vmem:[%s287 + $0x1c0] sm:$0xff] %v1837
        %1948 = vst [vmem:[%s287 + $0x1c8] sm:$0xff] %v1666
        %1949 = vst [vmem:[%s287 + $0x1d0] sm:$0xff] %v1668
        %1950 = vst [vmem:[%s287 + $0x1d8] sm:$0xff] %v1840
        %1951 = vst [vmem:[%s287 + $0x1e0] sm:$0xff] %v1672
        %1952 = vst [vmem:[%s287 + $0x1e8] sm:$0xff] %v1674
        %1953 = vst [vmem:[%s287 + $0x1f0] sm:$0xff] %v1845
        %1954 = vst [vmem:[%s287 + $0x1f8] sm:$0xff] %v1676
        %1955 = vst [vmem:[%s287 + $0x200] sm:$0xff] %v1678
        %1956 = vst [vmem:[%s287 + $0x208] sm:$0xff] %v1848
        %1957 = vst [vmem:[%s287 + $0x210] sm:$0xff] %v1682
        %1958 = vst [vmem:[%s287 + $0x218] sm:$0xff] %v1684
        %1959 = vst [vmem:[%s287 + $0x220] sm:$0xff] %v1853
        %1960 = vst [vmem:[%s287 + $0x228] sm:$0xff] %v1686
        %1961 = vst [vmem:[%s287 + $0x230] sm:$0xff] %v1688
        %1962 = vst [vmem:[%s287 + $0x238] sm:$0xff] %v1856
        %1963 = vst [vmem:[%s287 + $0x240] sm:$0xff] %v1692
        %1964 = vst [vmem:[%s287 + $0x248] sm:$0xff] %v1694
        %1965 = vst [vmem:[%s287 + $0x250] sm:$0xff] %v1861
        %1966 = vst [vmem:[%s287 + $0x258] sm:$0xff] %v1696
        %1967 = vst [vmem:[%s287 + $0x260] sm:$0xff] %v1698
        %1968 = vst [vmem:[%s287 + $0x268] sm:$0xff] %v1864
        %1969 = vst [vmem:[%s287 + $0x270] sm:$0xff] %v1702
        %1970 = vst [vmem:[%s287 + $0x278] sm:$0xff] %v1704
        %1971 = vst [vmem:[%s287 + $0x280] sm:$0xff] %v1869
        %1972 = vst [vmem:[%s287 + $0x288] sm:$0xff] %v1706
        %1973 = vst [vmem:[%s287 + $0x290] sm:$0xff] %v1708
        %1974 = vst [vmem:[%s287 + $0x298] sm:$0xff] %v1872
        %1975 = vst [vmem:[%s287 + $0x2a0] sm:$0xff] %v1712
        %1976 = vst [vmem:[%s287 + $0x2a8] sm:$0xff] %v1714
        %1977 = vst [vmem:[%s287 + $0x2b0] sm:$0xff] %v1877
        %1978 = vst [vmem:[%s287 + $0x2b8] sm:$0xff] %v1716
        %1979 = vst [vmem:[%s287 + $0x2c0] sm:$0xff] %v1718
        %1980 = vst [vmem:[%s287 + $0x2c8] sm:$0xff] %v1880
        %1981 = vst [vmem:[%s287 + $0x2d0] sm:$0xff] %v1722
        %1982 = vst [vmem:[%s287 + $0x2d8] sm:$0xff] %v1724
        %1983 = vst [vmem:[%s287 + $0x2e0] sm:$0xff] %v1885
        %1984 = vst [vmem:[%s287 + $0x2e8] sm:$0xff] %v1726
        %1985 = vst [vmem:[%s287 + $0x2f0] sm:$0xff] %v1728
        %1986 = vst [vmem:[%s287 + $0x2f8] sm:$0xff] %v1888
        %s1987 = sand.u32 %s182, 1
        %s1988 = scalar_lea.sflag [#allocation4], %s1987
        %s1989 = sand.u32 %s182, 1
        %s1990 = smul.addr %s1989, 768
        %s1991 = scalar_lea.vmem [#allocation5], %s1990
        // Predicated region
        $region53: #{tpu_custom_call.1} parent=47 // pred_check
          %p1992 = pneg %p192
        $region54: #{tpu_custom_call.1} parent=47 // pred_check_branch
          %1994 = sbr.rel (%p1992) target = $region56
        $region55: #{tpu_custom_call.1} parent=47 // pred_region
          %s1995 = smul.u32 32, %s22
          %s1997 = ssub.s32 12288, 12288
          %1998 = vsyncadd %s1988, %s1997
          %s1999 = smul.addr %s1995, 3
          %s2000 = smul.addr %s1999, 128
          %s2001 = scalar_lea.hbm %s7, %s2000
          %s2002 = sshll.u32 %s1991, 4
          %s2003 = int_to_ptr.vmem [resolvable:$true] %s2002
          %2008 = dma.vmem_to_hbm [thread:$0]  %s2003, 12288, %s2001, %s1988, 384, 384, 24
        $region56: #{tpu_custom_call.1} parent=47 // pred_fallthru
          _
      $region48: #{tpu_custom_call.1} parent=5 // pred_fallthru
        _
      %p2009 = scmp.le.s32.totalorder 2, %s17
      // Predicated region
      $region57: #{tpu_custom_call.1} parent=5 // pred_check
        %p2010 = pneg %p2009
      $region58: #{tpu_custom_call.1} parent=5 // pred_check_branch
        %2012 = sbr.rel (%p2010) target = $region60
      $region59: #{tpu_custom_call.1} parent=5 // pred_region
        %s2013 = ssub.s32 %s17, 2
        // Predicated region
        $region61: #{tpu_custom_call.1} parent=59 // pred_check
          %p2014 = pneg %p198
        $region62: #{tpu_custom_call.1} parent=59 // pred_check_branch
          %2016 = sbr.rel (%p2014) target = $region64
        $region63: #{tpu_custom_call.1} parent=59 // pred_region
          %s2017 = sand.u32 %s183, 1
          %s2018 = scalar_lea.sflag [#allocation4], %s2017
          %s2019 = sand.u32 %s183, 1
          %s2020 = smul.addr %s2019, 768
          %s2021 = scalar_lea.vmem [#allocation5], %s2020
          %2022 = dma.done %s2018, 12288
        $region64: #{tpu_custom_call.1} parent=59 // pred_fallthru
          _
      $region60: #{tpu_custom_call.1} parent=5 // pred_fallthru
        _
    $region6: #{tpu_custom_call.1} parent=1 // loop_footer
      %s21 = sadd.s32 1, %s17
    $region7: #{tpu_custom_call.1} parent=1 // loop_footer_branch
      %16 = sbr.rel target = $region3
    $region8: #{tpu_custom_call.1} parent=1 // loop_exit
      _
    %2023 = vsyncpa [#allocation3], 1
    %s2024 = scalar_lea.sflag [#allocation3], 1
    %2025 = vsyncpa %s2024, 1
    %2026 = vsyncpa [#allocation4], 1
    %s2027 = scalar_lea.sflag [#allocation4], 1
    %2028 = vsyncpa %s2027, 1

</llo_original>
